<compile_context>
chip_gen: v7x
topology: tpu7x:2x2x1
jax: 0.10.0
libtpu: 0.0.40
codegen_flags: <defaults>
</compile_context>

<pallas_src>
from functools import partial

import jax
import jax.numpy as jnp
from jax import lax
from jax.experimental import pallas as pl
from jax.experimental.pallas import tpu as pltpu


# ---------------------------------------------------------------------------
# Fused kernel: one grid step = one head group (all batches folded inside).
#   x_ref:      (B*N, C)        bf16
#   w_qkv_ref:  (1, 3*Cg, C)    bf16  (rows: [q_g | k_g | v_g], torch (out,in))
#   w_proj_ref: (1, C, Cg)      bf16  (W_proj columns for this head group)
#   out_ref:    (1, B*N, C)     f32   partial projection for this group
#   attn_ref:   (1, B*Hg, N, N) f32   softmax probs for this group's heads
# ---------------------------------------------------------------------------
def _attention_group_kernel(x_ref, w_qkv_ref, w_proj_ref, out_ref, attn_ref, *,
                            batch, seq, heads_per_group, head_dim, scale):
    B, N, Hg, D = batch, seq, heads_per_group, head_dim
    Cg = Hg * D

    x = x_ref[...]                                    # (B*N, C) bf16

    # qkv for this head group: one MXU matmul, f32 accumulation.
    qkv = lax.dot_general(
        x, w_qkv_ref[0],
        dimension_numbers=(((1,), (1,)), ((), ())),
        preferred_element_type=jnp.float32)           # (B*N, 3*Cg) f32

    q = qkv[:, 0:Cg] * scale                          # pre-scale q (cheapest spot)
    k = qkv[:, Cg:2 * Cg]
    v = qkv[:, 2 * Cg:3 * Cg]

    # One head-major relayout per tensor: (B*N, Hg*D) -> (B*Hg, N, D).
    def to_heads(t):
        return jnp.concatenate(
            [t[b * N:(b + 1) * N, h * D:(h + 1) * D][None]
             for b in range(B) for h in range(Hg)], axis=0)

    qh = to_heads(q).astype(jnp.bfloat16)             # (B*Hg, N, D)
    kh = to_heads(k).astype(jnp.bfloat16)
    vh = to_heads(v).astype(jnp.bfloat16)

    # Batched scores over all (batch, head) pairs: a single MXU contraction.
    s = jnp.einsum('bnd,bmd->bnm', qh, kh,
                   preferred_element_type=jnp.float32)   # (B*Hg, N, N) f32

    # Single max subtraction (the second max of the original is identically 0),
    # softmax in f32.  Exact divide: attn is an API output, approx reciprocal
    # would make rows sum to 1 only to ~1e-4.
    s = s - jnp.max(s, axis=-1, keepdims=True)
    e = jnp.exp(s)
    p = e / jnp.sum(e, axis=-1, keepdims=True)

    attn_ref[0] = p                                   # single store per step

    # Batched context: one MXU contraction.
    ctx = jnp.einsum('bnm,bmd->bnd', p.astype(jnp.bfloat16), vh,
                     preferred_element_type=jnp.float32)  # (B*Hg, N, D) f32

    # Reassemble this group's (B*N, Cg) context slab for the projection.
    ctx2d = jnp.concatenate(
        [jnp.concatenate([ctx[b * Hg + h] for h in range(Hg)], axis=-1)
         for b in range(B)], axis=0)                  # (B*N, Cg)

    # Partial output projection: ctx_g @ W_proj[:, group cols]^T.
    out_ref[0] = lax.dot_general(
        ctx2d.astype(jnp.bfloat16), w_proj_ref[0],
        dimension_numbers=(((1,), (1,)), ((), ())),
        preferred_element_type=jnp.float32)


# ---------------------------------------------------------------------------
# Full Attention forward (single fused pallas_call).
# ---------------------------------------------------------------------------
def attention_forward(x, params, num_heads):
    B, N, C = x.shape
    H = num_heads
    D = C // H
    scale = D ** (-0.5)

    # Two head groups -> two 'parallel' grid steps (keeps both v7x TensorCores
    # busy for any B); single-TC v5e/v6e run the whole batch in just 2 steps.
    G = 2 if H % 2 == 0 else 1
    Hg = H // G
    Cg = Hg * D

    w_qkv = params["w_qkv"]              # (3C, C) torch layout (out, in)
    w_proj = params["w_proj"]            # (C, C)  torch layout
    b_proj = params["b_proj"]            # (C,)

    # One-time parameter re-layout + bf16 cast (parameter-load-time work):
    #   qkv rows grouped per head group:  (G, 3*Cg, C) = [q_g | k_g | v_g]
    #   proj column slab per head group:  (G, C, Cg)
    w_qkv_g = (w_qkv.reshape(3, G, Cg, C).transpose(1, 0, 2, 3)
               .reshape(G, 3 * Cg, C).astype(jnp.bfloat16))
    w_proj_g = w_proj.reshape(C, G, Cg).transpose(1, 0, 2).astype(jnp.bfloat16)
    x2d = x.reshape(B * N, C).astype(jnp.bfloat16)

    kernel = partial(_attention_group_kernel, batch=B, seq=N,
                     heads_per_group=Hg, head_dim=D, scale=scale)

    out_parts, attn_parts = pl.pallas_call(
        kernel,
        out_shape=(
            jax.ShapeDtypeStruct((G, B * N, C), jnp.float32),
            jax.ShapeDtypeStruct((G, B * Hg, N, N), jnp.float32),
        ),
        grid=(G,),
        in_specs=[
            pl.BlockSpec((B * N, C), lambda g: (0, 0)),
            pl.BlockSpec((1, 3 * Cg, C), lambda g: (g, 0, 0)),
            pl.BlockSpec((1, C, Cg), lambda g: (g, 0, 0)),
        ],
        out_specs=(
            pl.BlockSpec((1, B * N, C), lambda g: (g, 0, 0)),
            pl.BlockSpec((1, B * Hg, N, N), lambda g: (g, 0, 0, 0)),
        ),
        compiler_params=pltpu.CompilerParams(
            dimension_semantics=("parallel",)),
    )(x2d, w_qkv_g, w_proj_g)

    # Combine the per-group partial projections (exact, linear) + bias, and
    # restore the module's output layouts (pure layout plumbing outside the
    # kernel).
    out = (out_parts.sum(axis=0) + b_proj[None, :]).reshape(B, N, C)
    attn = (attn_parts.reshape(G, B, Hg, N, N)
            .transpose(1, 0, 2, 3, 4).reshape(B, H, N, N))
    return out, attn


# ---------------------------------------------------------------------------
# Pure-JAX reference (mirrors the PyTorch forward) for the correctness check.
# ---------------------------------------------------------------------------
def attention_reference(x, params, num_heads):
    B, N, C = x.shape
    D = C // num_heads
    scale = D ** (-0.5)
    qkv = x @ params["w_qkv"].T
    qkv = qkv.reshape(B, N, 3, num_heads, D).transpose(2, 0, 3, 1, 4)
    q, k, v = qkv[0], qkv[1], qkv[2]
    attn = jnp.einsum("bhnd,bhmd->bhnm", q, k) * scale
    attn = attn - jnp.max(attn, axis=-1, keepdims=True)
    attn = jax.nn.softmax(attn, axis=-1)
    ctx = jnp.einsum("bhnm,bhmd->bhnd", attn, v)
    ctx = ctx.transpose(0, 2, 1, 3).reshape(B, N, C)
    out = ctx @ params["w_proj"].T + params["b_proj"]
    return out, attn


if __name__ == "__main__":
    # Small shapes consistent with the module: B=2, N=8, C=32, heads=8 (head_dim=4).
    B, N, C, H = 2, 8, 32, 8

    key = jax.random.PRNGKey(0)
    k_x, k_qkv, k_proj, k_pb = jax.random.split(key, 4)

    x = jax.random.normal(k_x, (B, N, C), dtype=jnp.float32)

    params = {
        # torch nn.Linear stores weight as (out_features, in_features)
        "w_qkv": 0.02 * jax.random.normal(k_qkv, (3 * C, C), dtype=jnp.float32),
        "w_proj": 0.02 * jax.random.normal(k_proj, (C, C), dtype=jnp.float32),
        "b_proj": 0.01 * jax.random.normal(k_pb, (C,), dtype=jnp.float32),
    }

    out, attn = attention_forward(x, params, num_heads=H)
    jax.block_until_ready((out, attn))

    ref_out, ref_attn = attention_reference(x, params, num_heads=H)
    assert out.shape == (B, N, C) and attn.shape == (B, H, N, N)
    # bf16 MXU operands with f32 accumulation: estimated error is >10x inside
    # this tolerance at these magnitudes (validated against the f32 reference).
    assert jnp.allclose(out, ref_out, atol=1e-3, rtol=1e-3)
    assert jnp.allclose(attn, ref_attn, atol=1e-3, rtol=1e-3)

    print("KERNEL_OK")
</pallas_src>

<mosaic_0001>
module attributes {stable_mosaic.version = 11 : i64} {
  func.func @_attention_group_kernel(%arg0: i32, %arg1: memref<16x32xbf16, #tpu.memory_space<vmem>>, %arg2: memref<1x48x32xbf16, #tpu.memory_space<vmem>>, %arg3: memref<1x32x16xbf16, #tpu.memory_space<vmem>>, %arg4: memref<1x16x32xf32, #tpu.memory_space<vmem>>, %arg5: memref<1x8x8x8xf32, #tpu.memory_space<vmem>>) attributes {dimension_semantics = [#tpu.dimension_semantics<parallel>], iteration_bounds = array<i64: 2>, scalar_prefetch = 0 : i64, scratch_operands = 0 : i64, tpu.core_type = #tpu.core_type<tc>, window_params = [{pipeline_mode = #tpu.pipeline_mode<synchronous>, transform_indices = @transform_0, window_bounds = array<i64: 16, 32>}, {transform_indices = @transform_1, window_bounds = array<i64: 1, 48, 32>}, {transform_indices = @transform_2, window_bounds = array<i64: 1, 32, 16>}, {transform_indices = @transform_3, window_bounds = array<i64: 1, 16, 32>}, {transform_indices = @transform_4, window_bounds = array<i64: 1, 8, 8, 8>}]} {
    %c0 = arith.constant 0 : index
    %c0_0 = arith.constant 0 : index
    %0 = vector.load %arg1[%c0, %c0_0] : memref<16x32xbf16, #tpu.memory_space<vmem>>, vector<16x32xbf16>
    %c0_1 = arith.constant 0 : index
    %c0_2 = arith.constant 0 : index
    %c0_3 = arith.constant 0 : index
    %1 = vector.load %arg2[%c0_1, %c0_2, %c0_3] : memref<1x48x32xbf16, #tpu.memory_space<vmem>>, vector<1x48x32xbf16>
    %2 = vector.shape_cast %1 : vector<1x48x32xbf16> to vector<48x32xbf16>
    %cst = arith.constant dense<0.000000e+00> : vector<16x48xf32>
    %3 = tpu.matmul %0, %2, %cst {dimension_numbers = #tpu.dot_dimension_numbers<[1], [1], [0], [0], [0, 0, 1, 0], [], []>} : vector<16x32xbf16>, vector<48x32xbf16>, vector<16x48xf32> -> vector<16x48xf32>
    %4 = vector.extract_strided_slice %3 {offsets = [0, 0], sizes = [16, 16], strides = [1, 1]} : vector<16x48xf32> to vector<16x16xf32>
    %cst_4 = arith.constant 5.000000e-01 : f32
    %5 = vector.broadcast %cst_4 : f32 to vector<16x16xf32>
    %6 = arith.mulf %4, %5 : vector<16x16xf32>
    %7 = vector.extract_strided_slice %3 {offsets = [0, 16], sizes = [16, 16], strides = [1, 1]} : vector<16x48xf32> to vector<16x16xf32>
    %8 = vector.extract_strided_slice %3 {offsets = [0, 32], sizes = [16, 16], strides = [1, 1]} : vector<16x48xf32> to vector<16x16xf32>
    %9 = vector.extract_strided_slice %6 {offsets = [0, 0], sizes = [8, 4], strides = [1, 1]} : vector<16x16xf32> to vector<8x4xf32>
    %10 = vector.shape_cast %9 : vector<8x4xf32> to vector<1x8x4xf32>
    %11 = vector.extract_strided_slice %6 {offsets = [0, 4], sizes = [8, 4], strides = [1, 1]} : vector<16x16xf32> to vector<8x4xf32>
    %12 = vector.shape_cast %11 : vector<8x4xf32> to vector<1x8x4xf32>
    %13 = vector.extract_strided_slice %6 {offsets = [0, 8], sizes = [8, 4], strides = [1, 1]} : vector<16x16xf32> to vector<8x4xf32>
    %14 = vector.shape_cast %13 : vector<8x4xf32> to vector<1x8x4xf32>
    %15 = vector.extract_strided_slice %6 {offsets = [0, 12], sizes = [8, 4], strides = [1, 1]} : vector<16x16xf32> to vector<8x4xf32>
    %16 = vector.shape_cast %15 : vector<8x4xf32> to vector<1x8x4xf32>
    %17 = vector.extract_strided_slice %6 {offsets = [8, 0], sizes = [8, 4], strides = [1, 1]} : vector<16x16xf32> to vector<8x4xf32>
    %18 = vector.shape_cast %17 : vector<8x4xf32> to vector<1x8x4xf32>
    %19 = vector.extract_strided_slice %6 {offsets = [8, 4], sizes = [8, 4], strides = [1, 1]} : vector<16x16xf32> to vector<8x4xf32>
    %20 = vector.shape_cast %19 : vector<8x4xf32> to vector<1x8x4xf32>
    %21 = vector.extract_strided_slice %6 {offsets = [8, 8], sizes = [8, 4], strides = [1, 1]} : vector<16x16xf32> to vector<8x4xf32>
    %22 = vector.shape_cast %21 : vector<8x4xf32> to vector<1x8x4xf32>
    %23 = vector.extract_strided_slice %6 {offsets = [8, 12], sizes = [8, 4], strides = [1, 1]} : vector<16x16xf32> to vector<8x4xf32>
    %24 = vector.shape_cast %23 : vector<8x4xf32> to vector<1x8x4xf32>
    %25 = tpu.concatenate %10, %12, %14, %16, %18, %20, %22, %24 in 0 : vector<1x8x4xf32>, vector<1x8x4xf32>, vector<1x8x4xf32>, vector<1x8x4xf32>, vector<1x8x4xf32>, vector<1x8x4xf32>, vector<1x8x4xf32>, vector<1x8x4xf32> -> vector<8x8x4xf32>
    %26 = arith.truncf %25 : vector<8x8x4xf32> to vector<8x8x4xbf16>
    %27 = vector.extract_strided_slice %7 {offsets = [0, 0], sizes = [8, 4], strides = [1, 1]} : vector<16x16xf32> to vector<8x4xf32>
    %28 = vector.shape_cast %27 : vector<8x4xf32> to vector<1x8x4xf32>
    %29 = vector.extract_strided_slice %7 {offsets = [0, 4], sizes = [8, 4], strides = [1, 1]} : vector<16x16xf32> to vector<8x4xf32>
    %30 = vector.shape_cast %29 : vector<8x4xf32> to vector<1x8x4xf32>
    %31 = vector.extract_strided_slice %7 {offsets = [0, 8], sizes = [8, 4], strides = [1, 1]} : vector<16x16xf32> to vector<8x4xf32>
    %32 = vector.shape_cast %31 : vector<8x4xf32> to vector<1x8x4xf32>
    %33 = vector.extract_strided_slice %7 {offsets = [0, 12], sizes = [8, 4], strides = [1, 1]} : vector<16x16xf32> to vector<8x4xf32>
    %34 = vector.shape_cast %33 : vector<8x4xf32> to vector<1x8x4xf32>
    %35 = vector.extract_strided_slice %7 {offsets = [8, 0], sizes = [8, 4], strides = [1, 1]} : vector<16x16xf32> to vector<8x4xf32>
    %36 = vector.shape_cast %35 : vector<8x4xf32> to vector<1x8x4xf32>
    %37 = vector.extract_strided_slice %7 {offsets = [8, 4], sizes = [8, 4], strides = [1, 1]} : vector<16x16xf32> to vector<8x4xf32>
    %38 = vector.shape_cast %37 : vector<8x4xf32> to vector<1x8x4xf32>
    %39 = vector.extract_strided_slice %7 {offsets = [8, 8], sizes = [8, 4], strides = [1, 1]} : vector<16x16xf32> to vector<8x4xf32>
    %40 = vector.shape_cast %39 : vector<8x4xf32> to vector<1x8x4xf32>
    %41 = vector.extract_strided_slice %7 {offsets = [8, 12], sizes = [8, 4], strides = [1, 1]} : vector<16x16xf32> to vector<8x4xf32>
    %42 = vector.shape_cast %41 : vector<8x4xf32> to vector<1x8x4xf32>
    %43 = tpu.concatenate %28, %30, %32, %34, %36, %38, %40, %42 in 0 : vector<1x8x4xf32>, vector<1x8x4xf32>, vector<1x8x4xf32>, vector<1x8x4xf32>, vector<1x8x4xf32>, vector<1x8x4xf32>, vector<1x8x4xf32>, vector<1x8x4xf32> -> vector<8x8x4xf32>
    %44 = arith.truncf %43 : vector<8x8x4xf32> to vector<8x8x4xbf16>
    %45 = vector.extract_strided_slice %8 {offsets = [0, 0], sizes = [8, 4], strides = [1, 1]} : vector<16x16xf32> to vector<8x4xf32>
    %46 = vector.shape_cast %45 : vector<8x4xf32> to vector<1x8x4xf32>
    %47 = vector.extract_strided_slice %8 {offsets = [0, 4], sizes = [8, 4], strides = [1, 1]} : vector<16x16xf32> to vector<8x4xf32>
    %48 = vector.shape_cast %47 : vector<8x4xf32> to vector<1x8x4xf32>
    %49 = vector.extract_strided_slice %8 {offsets = [0, 8], sizes = [8, 4], strides = [1, 1]} : vector<16x16xf32> to vector<8x4xf32>
    %50 = vector.shape_cast %49 : vector<8x4xf32> to vector<1x8x4xf32>
    %51 = vector.extract_strided_slice %8 {offsets = [0, 12], sizes = [8, 4], strides = [1, 1]} : vector<16x16xf32> to vector<8x4xf32>
    %52 = vector.shape_cast %51 : vector<8x4xf32> to vector<1x8x4xf32>
    %53 = vector.extract_strided_slice %8 {offsets = [8, 0], sizes = [8, 4], strides = [1, 1]} : vector<16x16xf32> to vector<8x4xf32>
    %54 = vector.shape_cast %53 : vector<8x4xf32> to vector<1x8x4xf32>
    %55 = vector.extract_strided_slice %8 {offsets = [8, 4], sizes = [8, 4], strides = [1, 1]} : vector<16x16xf32> to vector<8x4xf32>
    %56 = vector.shape_cast %55 : vector<8x4xf32> to vector<1x8x4xf32>
    %57 = vector.extract_strided_slice %8 {offsets = [8, 8], sizes = [8, 4], strides = [1, 1]} : vector<16x16xf32> to vector<8x4xf32>
    %58 = vector.shape_cast %57 : vector<8x4xf32> to vector<1x8x4xf32>
    %59 = vector.extract_strided_slice %8 {offsets = [8, 12], sizes = [8, 4], strides = [1, 1]} : vector<16x16xf32> to vector<8x4xf32>
    %60 = vector.shape_cast %59 : vector<8x4xf32> to vector<1x8x4xf32>
    %61 = tpu.concatenate %46, %48, %50, %52, %54, %56, %58, %60 in 0 : vector<1x8x4xf32>, vector<1x8x4xf32>, vector<1x8x4xf32>, vector<1x8x4xf32>, vector<1x8x4xf32>, vector<1x8x4xf32>, vector<1x8x4xf32>, vector<1x8x4xf32> -> vector<8x8x4xf32>
    %62 = arith.truncf %61 : vector<8x8x4xf32> to vector<8x8x4xbf16>
    "tpu.trace_start"() <{level = 10 : i32, message = "bnd,bmd->bnm"}> : () -> ()
    %cst_5 = arith.constant dense<0.000000e+00> : vector<8x8x8xf32>
    %63 = tpu.matmul %26, %44, %cst_5 {dimension_numbers = #tpu.dot_dimension_numbers<[2], [2], [1], [1], [0, 0, 0, 1, 1, 1], [0], [0]>} : vector<8x8x4xbf16>, vector<8x8x4xbf16>, vector<8x8x8xf32> -> vector<8x8x8xf32>
    "tpu.trace_stop"() : () -> ()
    %cst_6 = arith.constant dense<0xFF800000> : vector<8x8xf32>
    %64 = vector.multi_reduction <maximumf>, %63, %cst_6 [2] : vector<8x8x8xf32> to vector<8x8xf32>
    %65 = vector.shape_cast %64 : vector<8x8xf32> to vector<8x8x1xf32>
    %66 = vector.broadcast %65 : vector<8x8x1xf32> to vector<8x8x8xf32>
    %67 = arith.subf %63, %66 : vector<8x8x8xf32>
    %68 = math.exp %67 : vector<8x8x8xf32>
    %cst_7 = arith.constant dense<0.000000e+00> : vector<8x8xf32>
    %69 = vector.multi_reduction <add>, %68, %cst_7 [2] : vector<8x8x8xf32> to vector<8x8xf32>
    %70 = vector.shape_cast %69 : vector<8x8xf32> to vector<8x8x1xf32>
    %71 = vector.broadcast %70 : vector<8x8x1xf32> to vector<8x8x8xf32>
    %72 = arith.divf %68, %71 : vector<8x8x8xf32>
    %c0_8 = arith.constant 0 : index
    %c0_9 = arith.constant 0 : index
    %c0_10 = arith.constant 0 : index
    %c0_11 = arith.constant 0 : index
    %73 = vector.load %arg5[%c0_8, %c0_9, %c0_10, %c0_11] : memref<1x8x8x8xf32, #tpu.memory_space<vmem>>, vector<1x8x8x8xf32>
    %74 = vector.shape_cast %73 : vector<1x8x8x8xf32> to vector<8x8x8xf32>
    %75 = vector.shape_cast %72 : vector<8x8x8xf32> to vector<1x8x8x8xf32>
    tpu.vector_store %arg5[%c0_8, %c0_9, %c0_10, %c0_11], %75 {strides = array<i32>} : memref<1x8x8x8xf32, #tpu.memory_space<vmem>>, vector<1x8x8x8xf32>,
    %76 = arith.truncf %72 : vector<8x8x8xf32> to vector<8x8x8xbf16>
    "tpu.trace_start"() <{level = 10 : i32, message = "bnm,bmd->bnd"}> : () -> ()
    %cst_12 = arith.constant dense<0.000000e+00> : vector<8x8x4xf32>
    %77 = tpu.matmul %76, %62, %cst_12 {dimension_numbers = #tpu.dot_dimension_numbers<[2], [1], [1], [2], [0, 0, 0, 1, 1, 2], [0], [0]>} : vector<8x8x8xbf16>, vector<8x8x4xbf16>, vector<8x8x4xf32> -> vector<8x8x4xf32>
    "tpu.trace_stop"() : () -> ()
    %78 = vector.extract_strided_slice %77 {offsets = [0, 0, 0], sizes = [1, 8, 4], strides = [1, 1, 1]} : vector<8x8x4xf32> to vector<1x8x4xf32>
    %79 = vector.shape_cast %78 : vector<1x8x4xf32> to vector<8x4xf32>
    %80 = vector.extract_strided_slice %77 {offsets = [1, 0, 0], sizes = [1, 8, 4], strides = [1, 1, 1]} : vector<8x8x4xf32> to vector<1x8x4xf32>
    %81 = vector.shape_cast %80 : vector<1x8x4xf32> to vector<8x4xf32>
    %82 = vector.extract_strided_slice %77 {offsets = [2, 0, 0], sizes = [1, 8, 4], strides = [1, 1, 1]} : vector<8x8x4xf32> to vector<1x8x4xf32>
    %83 = vector.shape_cast %82 : vector<1x8x4xf32> to vector<8x4xf32>
    %84 = vector.extract_strided_slice %77 {offsets = [3, 0, 0], sizes = [1, 8, 4], strides = [1, 1, 1]} : vector<8x8x4xf32> to vector<1x8x4xf32>
    %85 = vector.shape_cast %84 : vector<1x8x4xf32> to vector<8x4xf32>
    %86 = tpu.concatenate %79, %81, %83, %85 in 1 : vector<8x4xf32>, vector<8x4xf32>, vector<8x4xf32>, vector<8x4xf32> -> vector<8x16xf32>
    %87 = vector.extract_strided_slice %77 {offsets = [4, 0, 0], sizes = [1, 8, 4], strides = [1, 1, 1]} : vector<8x8x4xf32> to vector<1x8x4xf32>
    %88 = vector.shape_cast %87 : vector<1x8x4xf32> to vector<8x4xf32>
    %89 = vector.extract_strided_slice %77 {offsets = [5, 0, 0], sizes = [1, 8, 4], strides = [1, 1, 1]} : vector<8x8x4xf32> to vector<1x8x4xf32>
    %90 = vector.shape_cast %89 : vector<1x8x4xf32> to vector<8x4xf32>
    %91 = vector.extract_strided_slice %77 {offsets = [6, 0, 0], sizes = [1, 8, 4], strides = [1, 1, 1]} : vector<8x8x4xf32> to vector<1x8x4xf32>
    %92 = vector.shape_cast %91 : vector<1x8x4xf32> to vector<8x4xf32>
    %93 = vector.extract_strided_slice %77 {offsets = [7, 0, 0], sizes = [1, 8, 4], strides = [1, 1, 1]} : vector<8x8x4xf32> to vector<1x8x4xf32>
    %94 = vector.shape_cast %93 : vector<1x8x4xf32> to vector<8x4xf32>
    %95 = tpu.concatenate %88, %90, %92, %94 in 1 : vector<8x4xf32>, vector<8x4xf32>, vector<8x4xf32>, vector<8x4xf32> -> vector<8x16xf32>
    %96 = tpu.concatenate %86, %95 in 0 : vector<8x16xf32>, vector<8x16xf32> -> vector<16x16xf32>
    %97 = arith.truncf %96 : vector<16x16xf32> to vector<16x16xbf16>
    %c0_13 = arith.constant 0 : index
    %c0_14 = arith.constant 0 : index
    %c0_15 = arith.constant 0 : index
    %98 = vector.load %arg3[%c0_13, %c0_14, %c0_15] : memref<1x32x16xbf16, #tpu.memory_space<vmem>>, vector<1x32x16xbf16>
    %99 = vector.shape_cast %98 : vector<1x32x16xbf16> to vector<32x16xbf16>
    %cst_16 = arith.constant dense<0.000000e+00> : vector<16x32xf32>
    %100 = tpu.matmul %97, %99, %cst_16 {dimension_numbers = #tpu.dot_dimension_numbers<[1], [1], [0], [0], [0, 0, 1, 0], [], []>} : vector<16x16xbf16>, vector<32x16xbf16>, vector<16x32xf32> -> vector<16x32xf32>
    %c0_17 = arith.constant 0 : index
    %c0_18 = arith.constant 0 : index
    %c0_19 = arith.constant 0 : index
    %101 = vector.load %arg4[%c0_17, %c0_18, %c0_19] : memref<1x16x32xf32, #tpu.memory_space<vmem>>, vector<1x16x32xf32>
    %102 = vector.shape_cast %101 : vector<1x16x32xf32> to vector<16x32xf32>
    %103 = vector.shape_cast %100 : vector<16x32xf32> to vector<1x16x32xf32>
    tpu.vector_store %arg4[%c0_17, %c0_18, %c0_19], %103 {strides = array<i32>} : memref<1x16x32xf32, #tpu.memory_space<vmem>>, vector<1x16x32xf32>,
    return
  }
  func.func @transform_0(%arg0: i32) -> (i32, i32) {
    %c0_i32 = arith.constant 0 : i32
    %c0_i32_0 = arith.constant 0 : i32
    %c0_i32_1 = arith.constant 0 : i32
    return %c0_i32, %c0_i32_0 : i32, i32
  }
  func.func @transform_1(%arg0: i32) -> (i32, i32, i32) {
    %c0_i32 = arith.constant 0 : i32
    %c0_i32_0 = arith.constant 0 : i32
    %c0_i32_1 = arith.constant 0 : i32
    return %arg0, %c0_i32, %c0_i32_0 : i32, i32, i32
  }
  func.func @transform_2(%arg0: i32) -> (i32, i32, i32) {
    %c0_i32 = arith.constant 0 : i32
    %c0_i32_0 = arith.constant 0 : i32
    %c0_i32_1 = arith.constant 0 : i32
    return %arg0, %c0_i32, %c0_i32_0 : i32, i32, i32
  }
  func.func @transform_3(%arg0: i32) -> (i32, i32, i32) {
    %c0_i32 = arith.constant 0 : i32
    %c0_i32_0 = arith.constant 0 : i32
    %c0_i32_1 = arith.constant 0 : i32
    return %arg0, %c0_i32, %c0_i32_0 : i32, i32, i32
  }
  func.func @transform_4(%arg0: i32) -> (i32, i32, i32, i32) {
    %c0_i32 = arith.constant 0 : i32
    %c0_i32_0 = arith.constant 0 : i32
    %c0_i32_1 = arith.constant 0 : i32
    %c0_i32_2 = arith.constant 0 : i32
    return %arg0, %c0_i32, %c0_i32_0, %c0_i32_1 : i32, i32, i32, i32
  }
}

</mosaic_0001>

<llo_original>
// kernel: tpu_custom_call.1
$region0: #{tpu_custom_call.1}
  #allocation0 [shape = 'u32[]', space=smem, size = 0x4, offset = 0x4, fixed_abs, tag = 'smem constant byte address 0x4 - core index']
  #allocation1 [shape = 'u32[144,128]{1,0:T(1,128)}', space=vmem, size = 0x12000, scoped, tag = 'internal scratch']
  %s0 = inlined_call_operand.vmem [shape: bf16[16,32], index: 0, kind: input, shape index: {}]
  %s1 = inlined_call_operand.vmem [shape: bf16[2,48,32], index: 1, kind: input, shape index: {}]
  %s2 = inlined_call_operand.vmem [shape: bf16[2,32,16], index: 2, kind: input, shape index: {}]
  %s3 = inlined_call_operand.hbm [shape: f32[2,16,32], index: 3, kind: output, shape index: {0}]
  %s4 = inlined_call_operand.hbm [shape: f32[2,8,8,8], index: 4, kind: output, shape index: {1}]
  %5 = xla_tuple %s3, %s4
  %s6 = sld [smem:[#allocation0]]
  $region53: #{tpu_custom_call.1} parent=0
    _
  %s8 = ssub.s32 1, %s6
  %s9 = scalar_select 0, %s8, %s6
  $region1: #{tpu_custom_call.1} parent=0
    #allocation2 [shape = 'u8[16384]{0}', space=vmem, size = 0x4000, scoped, tag = 'output window, operand 0']
    #allocation3 [shape = 's32[2]{0}', space=sflag, size = 0x8, scoped, tag = 'scoped memory for tpu_custom_call.1']
    #allocation4 [shape = 'u8[65536]{0}', space=vmem, size = 0x10000, scoped, tag = 'output window, operand 1']
    #allocation5 [shape = 's32[2]{0}', space=sflag, size = 0x8, scoped, tag = 'scoped memory for tpu_custom_call.1']
    %10 = vsyncpa [#allocation3], 0
    %s11 = scalar_lea.sflag [#allocation3], 1
    %12 = vsyncpa %s11, 0
    %13 = vsyncpa [#allocation5], 0
    %s14 = scalar_lea.sflag [#allocation5], 1
    %15 = vsyncpa %s14, 0
    loop: start=0, step=1, limit=4
    $region2: #{tpu_custom_call.1} parent=1 // loop_pre_header
      _
    $region3: #{tpu_custom_call.1} parent=1 // loop_header
      %s17 = sphi 0, %s21
      %p18 = scmp.ge.s32.totalorder %s17, 4
      %s25 = sphi 0, %s25
      %s27 = sphi 0, %s25
      %s28 = sphi 0, %s27
      %s42 = sphi 0, %s28
      %s48 = sphi 0, %s50
      %s51 = sphi 0, %s48
      %s52 = sphi 0, %s51
      %s68 = sphi 0, %s52
      %s74 = sphi 0, %s76
      %s77 = sphi 0, %s74
      %s78 = sphi 0, %s77
      %s94 = sphi 0, %s78
      %s100 = sphi 0, %s102
      %s103 = sphi 0, %s100
      %s104 = sphi 0, %s103
      %s120 = sphi 0, %s104
      %s126 = sphi 0, %s128
      %s129 = sphi 0, %s126
      %s130 = sphi 0, %s129
      %s146 = sphi 0, %s130
    $region4: #{tpu_custom_call.1} parent=1 // loop_header_branch
      %20 = sbr.rel (%p18) target = $region8
    $region5: #{tpu_custom_call.1} parent=1 // loop_body
      %s22 = ssub.s32 %s17, 1
      %s23 = ssub.s32 %s17, 2
      %s24 = sadd.s32 %s17, 1
      %s26 = sadd.s32 %s25, 1
      %p29 = scmp.eq.s32.totalorder %s17, 1
      %p30 = scmp.ne.s32.totalorder %s25, %s27
      %p31 = scmp.eq.s32.totalorder %s17, 0
      %p32 = por %p30, %p31
      %p33 = scmp.ne.s32.totalorder %s25, %s27
      %p34 = scmp.eq.s32.totalorder %s22, 1
      %p35 = por %p33, %p34
      %p36 = scmp.ne.s32.totalorder %s27, %s28
      %p37 = scmp.eq.s32.totalorder %s22, 0
      %p38 = por %p36, %p37
      %p39 = scmp.ne.s32.totalorder %s27, %s28
      %p40 = scmp.eq.s32.totalorder %s23, 1
      %p41 = por %p39, %p40
      %p43 = scmp.ne.s32.totalorder %s28, %s42
      %p44 = scmp.eq.s32.totalorder %s23, 0
      %p45 = por %p43, %p44
      %s46 = ssub.s32 %s17, %s24
      %p47 = scmp.eq.s32.totalorder %s46, 0
      %s49 = sadd.s32 %s48, 1
      %s50 = scalar_select %p47, %s48, %s49
      %p53 = pneg %p47
      %p54 = scmp.eq.s32.totalorder %s17, 1
      %p55 = por %p53, %p54
      %p56 = scmp.ne.s32.totalorder %s48, %s51
      %p57 = scmp.eq.s32.totalorder %s17, 0
      %p58 = por %p56, %p57
      %p59 = scmp.ne.s32.totalorder %s48, %s51
      %p60 = scmp.eq.s32.totalorder %s22, 1
      %p61 = por %p59, %p60
      %p62 = scmp.ne.s32.totalorder %s51, %s52
      %p63 = scmp.eq.s32.totalorder %s22, 0
      %p64 = por %p62, %p63
      %p65 = scmp.ne.s32.totalorder %s51, %s52
      %p66 = scmp.eq.s32.totalorder %s23, 1
      %p67 = por %p65, %p66
      %p69 = scmp.ne.s32.totalorder %s52, %s68
      %p70 = scmp.eq.s32.totalorder %s23, 0
      %p71 = por %p69, %p70
      %s72 = ssub.s32 %s17, %s24
      %p73 = scmp.eq.s32.totalorder %s72, 0
      %s75 = sadd.s32 %s74, 1
      %s76 = scalar_select %p73, %s74, %s75
      %p79 = pneg %p73
      %p80 = scmp.eq.s32.totalorder %s17, 1
      %p81 = por %p79, %p80
      %p82 = scmp.ne.s32.totalorder %s74, %s77
      %p83 = scmp.eq.s32.totalorder %s17, 0
      %p84 = por %p82, %p83
      %p85 = scmp.ne.s32.totalorder %s74, %s77
      %p86 = scmp.eq.s32.totalorder %s22, 1
      %p87 = por %p85, %p86
      %p88 = scmp.ne.s32.totalorder %s77, %s78
      %p89 = scmp.eq.s32.totalorder %s22, 0
      %p90 = por %p88, %p89
      %p91 = scmp.ne.s32.totalorder %s77, %s78
      %p92 = scmp.eq.s32.totalorder %s23, 1
      %p93 = por %p91, %p92
      %p95 = scmp.ne.s32.totalorder %s78, %s94
      %p96 = scmp.eq.s32.totalorder %s23, 0
      %p97 = por %p95, %p96
      %s98 = ssub.s32 %s17, %s24
      %p99 = scmp.eq.s32.totalorder %s98, 0
      %s101 = sadd.s32 %s100, 1
      %s102 = scalar_select %p99, %s100, %s101
      %p105 = pneg %p99
      %p106 = scmp.eq.s32.totalorder %s17, 1
      %p107 = por %p105, %p106
      %p108 = scmp.ne.s32.totalorder %s100, %s103
      %p109 = scmp.eq.s32.totalorder %s17, 0
      %p110 = por %p108, %p109
      %p111 = scmp.ne.s32.totalorder %s100, %s103
      %p112 = scmp.eq.s32.totalorder %s22, 1
      %p113 = por %p111, %p112
      %p114 = scmp.ne.s32.totalorder %s103, %s104
      %p115 = scmp.eq.s32.totalorder %s22, 0
      %p116 = por %p114, %p115
      %p117 = scmp.ne.s32.totalorder %s103, %s104
      %p118 = scmp.eq.s32.totalorder %s23, 1
      %p119 = por %p117, %p118
      %p121 = scmp.ne.s32.totalorder %s104, %s120
      %p122 = scmp.eq.s32.totalorder %s23, 0
      %p123 = por %p121, %p122
      %s124 = ssub.s32 %s17, %s24
      %p125 = scmp.eq.s32.totalorder %s124, 0
      %s127 = sadd.s32 %s126, 1
      %s128 = scalar_select %p125, %s126, %s127
      %p131 = pneg %p125
      %p132 = scmp.eq.s32.totalorder %s17, 1
      %p133 = por %p131, %p132
      %p134 = scmp.ne.s32.totalorder %s126, %s129
      %p135 = scmp.eq.s32.totalorder %s17, 0
      %p136 = por %p134, %p135
      %p137 = scmp.ne.s32.totalorder %s126, %s129
      %p138 = scmp.eq.s32.totalorder %s22, 1
      %p139 = por %p137, %p138
      %p140 = scmp.ne.s32.totalorder %s129, %s130
      %p141 = scmp.eq.s32.totalorder %s22, 0
      %p142 = por %p140, %p141
      %p143 = scmp.ne.s32.totalorder %s129, %s130
      %p144 = scmp.eq.s32.totalorder %s23, 1
      %p145 = por %p143, %p144
      %p147 = scmp.ne.s32.totalorder %s130, %s146
      %p148 = scmp.eq.s32.totalorder %s23, 0
      %p149 = por %p147, %p148
      %p150 = scmp.le.s32.totalorder 1, %s17
      %p151 = scmp.lt.s32.totalorder %s17, 3
      %p152 = pnand %p150, %p151
      %p153 = pneg %p152
      // Predicated region
      $region9: #{tpu_custom_call.1} parent=5 // pred_check
        _
      $region10: #{tpu_custom_call.1} parent=5 // pred_check_branch
        %155 = sbr.rel (%p152) target = $region12
      $region11: #{tpu_custom_call.1} parent=5 // pred_region
        %s156 = ssub.s32 %s17, 1
        // Predicated region
        $region13: #{tpu_custom_call.1} parent=11 // pred_check
          %p157 = pneg %p38
        $region14: #{tpu_custom_call.1} parent=11 // pred_check_branch
          %159 = sbr.rel (%p157) target = $region16
        $region15: #{tpu_custom_call.1} parent=11 // pred_region
          _
        $region16: #{tpu_custom_call.1} parent=11 // pred_fallthru
          _
      $region12: #{tpu_custom_call.1} parent=5 // pred_fallthru
        _
      %p160 = scmp.lt.s32.totalorder %s17, 2
      // Predicated region
      $region17: #{tpu_custom_call.1} parent=5 // pred_check
        %p161 = pneg %p160
      $region18: #{tpu_custom_call.1} parent=5 // pred_check_branch
        %163 = sbr.rel (%p161) target = $region20
      $region19: #{tpu_custom_call.1} parent=5 // pred_region
        // Predicated region
        $region21: #{tpu_custom_call.1} parent=19 // pred_check
          %p164 = pneg %p58
        $region22: #{tpu_custom_call.1} parent=19 // pred_check_branch
          %166 = sbr.rel (%p164) target = $region24
        $region23: #{tpu_custom_call.1} parent=19 // pred_region
          %p167 = scmp.lt.s32.totalorder %s17, 1
          %s168 = scalar_select %p167, %s17, 1
          %s169 = smul.addr %s168, 6
          %s170 = smul.addr %s169, 4
          %s171 = scalar_lea.vmem %s1, %s170
        $region24: #{tpu_custom_call.1} parent=19 // pred_fallthru
          _
        // Predicated region
        $region25: #{tpu_custom_call.1} parent=19 // pred_check
          %p172 = pneg %p84
        $region26: #{tpu_custom_call.1} parent=19 // pred_check_branch
          %174 = sbr.rel (%p172) target = $region28
        $region27: #{tpu_custom_call.1} parent=19 // pred_region
          %p175 = scmp.lt.s32.totalorder %s17, 1
          %s176 = scalar_select %p175, %s17, 1
          %s177 = smul.addr %s176, 4
          %s178 = smul.addr %s177, 4
          %s179 = scalar_lea.vmem %s2, %s178
        $region28: #{tpu_custom_call.1} parent=19 // pred_fallthru
          _
      $region20: #{tpu_custom_call.1} parent=5 // pred_fallthru
        _
      %p180 = scmp.le.s32.totalorder 1, %s17
      %p181 = scmp.lt.s32.totalorder %s17, 3
      %p182 = pnand %p180, %p181
      %p183 = pneg %p182
      // Predicated region
      $region29: #{tpu_custom_call.1} parent=5 // pred_check
        _
      $region30: #{tpu_custom_call.1} parent=5 // pred_check_branch
        %185 = sbr.rel (%p182) target = $region32
      $region31: #{tpu_custom_call.1} parent=5 // pred_region
        %s186 = ssub.s32 %s17, 1
        %p187 = pneg %p38
        %p188 = pneg %p35
        %p189 = scmp.lt.s32.totalorder %s22, 1
        %s190 = scalar_select %p189, %s22, 1
        %s191 = smul.addr %s190, 6
        %s192 = smul.addr %s191, 4
        %s193 = scalar_lea.vmem %s1, %s192
        %p194 = pneg %p64
        %p195 = pneg %p61
        %p196 = scmp.lt.s32.totalorder %s22, 1
        %s197 = scalar_select %p196, %s22, 1
        %s198 = smul.addr %s197, 4
        %s199 = smul.addr %s198, 4
        %s200 = scalar_lea.vmem %s2, %s199
        %p201 = pneg %p90
        %p202 = pneg %p87
        %p203 = pneg %p116
        %p204 = pneg %p113
        %s205 = sand.u32 %s103, 1
        %s206 = scalar_lea.sflag [#allocation3], %s205
        %s207 = sand.u32 %s103, 1
        %s208 = smul.addr %s207, 16
        %s209 = scalar_lea.vmem [#allocation2], %s208
        %p210 = pneg %p142
        %p211 = pneg %p139
        %s212 = sand.u32 %s129, 1
        %s213 = scalar_lea.sflag [#allocation5], %s212
        %s214 = sand.u32 %s129, 1
        %s215 = smul.addr %s214, 64
        %s216 = scalar_lea.vmem [#allocation4], %s215
        %p217 = scmp.lt.s32.totalorder %s22, 1
        %s218 = scalar_select %p217, %s22, 1
        %s219 = smul.addr %s218, 6
        %s220 = smul.addr %s219, 4
        %s221 = scalar_lea.vmem %s1, %s220
        %p222 = scmp.lt.s32.totalorder %s22, 1
        %s223 = scalar_select %p222, %s22, 1
        %s224 = smul.addr %s223, 4
        %s225 = smul.addr %s224, 4
        %s226 = scalar_lea.vmem %s2, %s225
        %v228 = vld [vmem:[%s0] sm:$0xf]
        %v229 = vld [vmem:[%s0 + $0x4] sm:$0xf]
        %v230 = vld [vmem:[%s221] sm:$0xf]
        %v231 = vld [vmem:[%s221 + $0x4] sm:$0xf]
        %v232 = vld [vmem:[%s221 + $0x8] sm:$0xf]
        %v233 = vld [vmem:[%s221 + $0xc] sm:$0xf]
        %v234 = vld [vmem:[%s221 + $0x10] sm:$0xf]
        %v235 = vld [vmem:[%s221 + $0x14] sm:$0xf]
        %v238 = vunpack.c.l.b16 %v228
        %v239 = vunpack.c.l.b16 %v229
        %v240 = vpack.c.b16 %v239, %v238
        %v247 = vunpack.c.l.b16 %v230
        %v248 = vunpack.c.l.b16 %v231
        %v249 = vunpack.c.l.b16 %v232
        %v250 = vunpack.c.l.b16 %v233
        %v251 = vunpack.c.l.b16 %v234
        %v252 = vunpack.c.l.b16 %v235
        %v253 = vpack.c.b16 %v248, %v247
        %v254 = vpack.c.b16 %v250, %v249
        %v255 = vpack.c.b16 %v252, %v251
        %vm256 = vcmask 261120
        %v258 = vsel %vm256, %v240, 0
        %v261 = vsel %vm256, %v253, 0
        %v264 = vsel %vm256, %v254, 0
        %v267 = vsel %vm256, %v255, 0
        %269 = vmatprep.subr.bf16.mxu0 0
        %270 = vmatpush1.bf16.xpose.msra.mxu0 %v261
        %271 = vmatprep.subr.bf16.mxu0 0
        %272 = vmatpush1.bf16.xpose.msra.mxu0 %v264
        %273 = vmatprep.subr.bf16.mxu0 0
        %274 = vmatpush1.bf16.xpose.msra.mxu0 %v267
        %275 = vmatprep.subr.bf16.mxu0 0
        %276 = vmatpush1.bf16.xpose.msra.mxu0 0
        %277 = vmatprep.subr.bf16.mxu0 0
        %278 = vmatpush1.bf16.xpose.msra.mxu0 0
        %279 = vmatprep.subr.bf16.mxu0 0
        %280 = vmatpush1.bf16.xpose.msra.mxu0 0
        %281 = vmatprep.subr.bf16.mxu0 0
        %282 = vmatpush1.bf16.xpose.msra.mxu0 0
        %283 = vmatprep.subr.bf16.mxu0 0
        %284 = vmatpush1.bf16.xpose.msra.mxu0 0
        %285 = vmatprep.subr.bf16.mxu0 0
        %286 = vmatpush1.bf16.xpose.msra.mxu0 0
        %287 = vmatprep.subr.bf16.mxu0 0
        %288 = vmatpush1.bf16.xpose.msra.mxu0 0
        %289 = vmatprep.subr.bf16.mxu0 0
        %290 = vmatpush1.bf16.xpose.msra.mxu0 0
        %291 = vmatprep.subr.bf16.mxu0 0
        %292 = vmatpush1.bf16.xpose.msra.mxu0 0
        %293 = vmatprep.subr.bf16.mxu0 0
        %294 = vmatpush1.bf16.xpose.msra.mxu0 0
        %295 = vmatprep.subr.bf16.mxu0 0
        %296 = vmatpush1.bf16.xpose.msra.mxu0 0
        %297 = vmatprep.subr.bf16.mxu0 0
        %298 = vmatpush1.bf16.xpose.msra.mxu0 0
        %299 = vmatprep.subr.bf16.mxu0 0
        %300 = vmatpush1.bf16.xpose.msra.mxu0 0
        %301 = vmatprep.mubr.bf16.mxu0 0
        %302 = vmatmul.mubr.bf16.gmra.mrb[0].mxu0 %v258
        %v303 = vpop.f32.mrb[0].mxu0
        %v304 = vadd.f32 0.0, %v303
        %v305 = vpop.f32.mrb[0].mxu0
        %v306 = vpop.f32.mrb[0].mxu0
        %v307 = vadd.f32 0.0, %v306
        %v308 = vpop.f32.mrb[0].mxu0
        %309 = vdwg.mxu0
        %v310 = vmul.f32 %v304, 0.5
        %v311 = vmul.f32 %v307, 0.5
        %313 = vrot.lane.b32.xlu0 %v310, 124
        %v314 = vpop.permute.xlu0 %313
        %316 = vrot.lane.b32.xlu0 %v310, 120
        %v317 = vpop.permute.xlu0 %316
        %319 = vrot.lane.b32.xlu0 %v310, 116
        %v320 = vpop.permute.xlu0 %319
        %323 = vrot.lane.b32.xlu0 %v311, 124
        %v324 = vpop.permute.xlu0 %323
        %326 = vrot.lane.b32.xlu0 %v311, 120
        %v327 = vpop.permute.xlu0 %326
        %329 = vrot.lane.b32.xlu0 %v311, 116
        %v330 = vpop.permute.xlu0 %329
        %v332 = vpack.c.bf16 %v310, %v310
        %v333 = vpack.c.bf16 %v314, %v314
        %v334 = vpack.c.bf16 %v317, %v317
        %v335 = vpack.c.bf16 %v320, %v320
        %v336 = vpack.c.bf16 %v311, %v311
        %v337 = vpack.c.bf16 %v324, %v324
        %v338 = vpack.c.bf16 %v327, %v327
        %v339 = vpack.c.bf16 %v330, %v330
        %341 = vrot.lane.b32.xlu0 %v304, 124
        %v342 = vpop.permute.xlu0 %341
        %344 = vrot.lane.b32.xlu0 %v304, 120
        %v345 = vpop.permute.xlu0 %344
        %347 = vrot.lane.b32.xlu0 %v304, 116
        %v348 = vpop.permute.xlu0 %347
        %351 = vrot.lane.b32.xlu0 %v307, 124
        %v352 = vpop.permute.xlu0 %351
        %354 = vrot.lane.b32.xlu0 %v307, 120
        %v355 = vpop.permute.xlu0 %354
        %357 = vrot.lane.b32.xlu0 %v307, 116
        %v358 = vpop.permute.xlu0 %357
        %v360 = vpack.c.bf16 %v304, %v304
        %v361 = vpack.c.bf16 %v342, %v342
        %v362 = vpack.c.bf16 %v345, %v345
        %v363 = vpack.c.bf16 %v348, %v348
        %v364 = vpack.c.bf16 %v307, %v307
        %v365 = vpack.c.bf16 %v352, %v352
        %v366 = vpack.c.bf16 %v355, %v355
        %v367 = vpack.c.bf16 %v358, %v358
        %369 = vrot.lane.b32.xlu0 %v360, 112
        %v370 = vpop.permute.xlu0 %369
        %vm371 = vcmask 31744
        %v373 = vsel %vm371, %v332, 0
        %v376 = vsel %vm371, %v370, 0
        %378 = vmatprep.subr.bf16.mxu0 0
        %379 = vmatpush1.bf16.xpose.msra.mxu0 %v376
        %380 = vmatprep.subr.bf16.mxu0 0
        %381 = vmatpush1.bf16.xpose.msra.mxu0 0
        %382 = vmatprep.subr.bf16.mxu0 0
        %383 = vmatpush1.bf16.xpose.msra.mxu0 0
        %384 = vmatprep.subr.bf16.mxu0 0
        %385 = vmatpush1.bf16.xpose.msra.mxu0 0
        %386 = vmatprep.subr.bf16.mxu0 0
        %387 = vmatpush1.bf16.xpose.msra.mxu0 0
        %388 = vmatprep.subr.bf16.mxu0 0
        %389 = vmatpush1.bf16.xpose.msra.mxu0 0
        %390 = vmatprep.subr.bf16.mxu0 0
        %391 = vmatpush1.bf16.xpose.msra.mxu0 0
        %392 = vmatprep.subr.bf16.mxu0 0
        %393 = vmatpush1.bf16.xpose.msra.mxu0 0
        %394 = vmatprep.subr.bf16.mxu0 0
        %395 = vmatpush1.bf16.xpose.msra.mxu0 0
        %396 = vmatprep.subr.bf16.mxu0 0
        %397 = vmatpush1.bf16.xpose.msra.mxu0 0
        %398 = vmatprep.subr.bf16.mxu0 0
        %399 = vmatpush1.bf16.xpose.msra.mxu0 0
        %400 = vmatprep.subr.bf16.mxu0 0
        %401 = vmatpush1.bf16.xpose.msra.mxu0 0
        %402 = vmatprep.subr.bf16.mxu0 0
        %403 = vmatpush1.bf16.xpose.msra.mxu0 0
        %404 = vmatprep.subr.bf16.mxu0 0
        %405 = vmatpush1.bf16.xpose.msra.mxu0 0
        %406 = vmatprep.subr.bf16.mxu0 0
        %407 = vmatpush1.bf16.xpose.msra.mxu0 0
        %408 = vmatprep.subr.bf16.mxu0 0
        %409 = vmatpush1.bf16.xpose.msra.mxu0 0
        %410 = vmatprep.mubr.bf16.mxu0 0
        %411 = vmatmul.mubr.bf16.gmra.mrb[0].mxu0 %v373
        %v412 = vpop.f32.mrb[0].mxu0
        %v413 = vadd.f32 0.0, %v412
        %v414 = vpop.f32.mrb[0].mxu0
        %v415 = vpop.f32.mrb[0].mxu0
        %v416 = vpop.f32.mrb[0].mxu0
        %417 = vdwg.mxu0
        %419 = vrot.lane.b32.xlu0 %v361, 112
        %v420 = vpop.permute.xlu0 %419
        %v422 = vsel %vm371, %v333, 0
        %v425 = vsel %vm371, %v420, 0
        %427 = vmatprep.subr.bf16.mxu0 0
        %428 = vmatpush1.bf16.xpose.msra.mxu0 %v425
        %429 = vmatprep.subr.bf16.mxu0 0
        %430 = vmatpush1.bf16.xpose.msra.mxu0 0
        %431 = vmatprep.subr.bf16.mxu0 0
        %432 = vmatpush1.bf16.xpose.msra.mxu0 0
        %433 = vmatprep.subr.bf16.mxu0 0
        %434 = vmatpush1.bf16.xpose.msra.mxu0 0
        %435 = vmatprep.subr.bf16.mxu0 0
        %436 = vmatpush1.bf16.xpose.msra.mxu0 0
        %437 = vmatprep.subr.bf16.mxu0 0
        %438 = vmatpush1.bf16.xpose.msra.mxu0 0
        %439 = vmatprep.subr.bf16.mxu0 0
        %440 = vmatpush1.bf16.xpose.msra.mxu0 0
        %441 = vmatprep.subr.bf16.mxu0 0
        %442 = vmatpush1.bf16.xpose.msra.mxu0 0
        %443 = vmatprep.subr.bf16.mxu0 0
        %444 = vmatpush1.bf16.xpose.msra.mxu0 0
        %445 = vmatprep.subr.bf16.mxu0 0
        %446 = vmatpush1.bf16.xpose.msra.mxu0 0
        %447 = vmatprep.subr.bf16.mxu0 0
        %448 = vmatpush1.bf16.xpose.msra.mxu0 0
        %449 = vmatprep.subr.bf16.mxu0 0
        %450 = vmatpush1.bf16.xpose.msra.mxu0 0
        %451 = vmatprep.subr.bf16.mxu0 0
        %452 = vmatpush1.bf16.xpose.msra.mxu0 0
        %453 = vmatprep.subr.bf16.mxu0 0
        %454 = vmatpush1.bf16.xpose.msra.mxu0 0
        %455 = vmatprep.subr.bf16.mxu0 0
        %456 = vmatpush1.bf16.xpose.msra.mxu0 0
        %457 = vmatprep.subr.bf16.mxu0 0
        %458 = vmatpush1.bf16.xpose.msra.mxu0 0
        %459 = vmatprep.mubr.bf16.mxu0 0
        %460 = vmatmul.mubr.bf16.gmra.mrb[0].mxu0 %v422
        %v461 = vpop.f32.mrb[0].mxu0
        %v462 = vadd.f32 0.0, %v461
        %v463 = vpop.f32.mrb[0].mxu0
        %v464 = vpop.f32.mrb[0].mxu0
        %v465 = vpop.f32.mrb[0].mxu0
        %466 = vdwg.mxu0
        %468 = vrot.lane.b32.xlu0 %v362, 112
        %v469 = vpop.permute.xlu0 %468
        %v471 = vsel %vm371, %v334, 0
        %v474 = vsel %vm371, %v469, 0
        %476 = vmatprep.subr.bf16.mxu0 0
        %477 = vmatpush1.bf16.xpose.msra.mxu0 %v474
        %478 = vmatprep.subr.bf16.mxu0 0
        %479 = vmatpush1.bf16.xpose.msra.mxu0 0
        %480 = vmatprep.subr.bf16.mxu0 0
        %481 = vmatpush1.bf16.xpose.msra.mxu0 0
        %482 = vmatprep.subr.bf16.mxu0 0
        %483 = vmatpush1.bf16.xpose.msra.mxu0 0
        %484 = vmatprep.subr.bf16.mxu0 0
        %485 = vmatpush1.bf16.xpose.msra.mxu0 0
        %486 = vmatprep.subr.bf16.mxu0 0
        %487 = vmatpush1.bf16.xpose.msra.mxu0 0
        %488 = vmatprep.subr.bf16.mxu0 0
        %489 = vmatpush1.bf16.xpose.msra.mxu0 0
        %490 = vmatprep.subr.bf16.mxu0 0
        %491 = vmatpush1.bf16.xpose.msra.mxu0 0
        %492 = vmatprep.subr.bf16.mxu0 0
        %493 = vmatpush1.bf16.xpose.msra.mxu0 0
        %494 = vmatprep.subr.bf16.mxu0 0
        %495 = vmatpush1.bf16.xpose.msra.mxu0 0
        %496 = vmatprep.subr.bf16.mxu0 0
        %497 = vmatpush1.bf16.xpose.msra.mxu0 0
        %498 = vmatprep.subr.bf16.mxu0 0
        %499 = vmatpush1.bf16.xpose.msra.mxu0 0
        %500 = vmatprep.subr.bf16.mxu0 0
        %501 = vmatpush1.bf16.xpose.msra.mxu0 0
        %502 = vmatprep.subr.bf16.mxu0 0
        %503 = vmatpush1.bf16.xpose.msra.mxu0 0
        %504 = vmatprep.subr.bf16.mxu0 0
        %505 = vmatpush1.bf16.xpose.msra.mxu0 0
        %506 = vmatprep.subr.bf16.mxu0 0
        %507 = vmatpush1.bf16.xpose.msra.mxu0 0
        %508 = vmatprep.mubr.bf16.mxu0 0
        %509 = vmatmul.mubr.bf16.gmra.mrb[0].mxu0 %v471
        %v510 = vpop.f32.mrb[0].mxu0
        %v511 = vadd.f32 0.0, %v510
        %v512 = vpop.f32.mrb[0].mxu0
        %v513 = vpop.f32.mrb[0].mxu0
        %v514 = vpop.f32.mrb[0].mxu0
        %515 = vdwg.mxu0
        %517 = vrot.lane.b32.xlu0 %v363, 112
        %v518 = vpop.permute.xlu0 %517
        %v520 = vsel %vm371, %v335, 0
        %v523 = vsel %vm371, %v518, 0
        %525 = vmatprep.subr.bf16.mxu0 0
        %526 = vmatpush1.bf16.xpose.msra.mxu0 %v523
        %527 = vmatprep.subr.bf16.mxu0 0
        %528 = vmatpush1.bf16.xpose.msra.mxu0 0
        %529 = vmatprep.subr.bf16.mxu0 0
        %530 = vmatpush1.bf16.xpose.msra.mxu0 0
        %531 = vmatprep.subr.bf16.mxu0 0
        %532 = vmatpush1.bf16.xpose.msra.mxu0 0
        %533 = vmatprep.subr.bf16.mxu0 0
        %534 = vmatpush1.bf16.xpose.msra.mxu0 0
        %535 = vmatprep.subr.bf16.mxu0 0
        %536 = vmatpush1.bf16.xpose.msra.mxu0 0
        %537 = vmatprep.subr.bf16.mxu0 0
        %538 = vmatpush1.bf16.xpose.msra.mxu0 0
        %539 = vmatprep.subr.bf16.mxu0 0
        %540 = vmatpush1.bf16.xpose.msra.mxu0 0
        %541 = vmatprep.subr.bf16.mxu0 0
        %542 = vmatpush1.bf16.xpose.msra.mxu0 0
        %543 = vmatprep.subr.bf16.mxu0 0
        %544 = vmatpush1.bf16.xpose.msra.mxu0 0
        %545 = vmatprep.subr.bf16.mxu0 0
        %546 = vmatpush1.bf16.xpose.msra.mxu0 0
        %547 = vmatprep.subr.bf16.mxu0 0
        %548 = vmatpush1.bf16.xpose.msra.mxu0 0
        %549 = vmatprep.subr.bf16.mxu0 0
        %550 = vmatpush1.bf16.xpose.msra.mxu0 0
        %551 = vmatprep.subr.bf16.mxu0 0
        %552 = vmatpush1.bf16.xpose.msra.mxu0 0
        %553 = vmatprep.subr.bf16.mxu0 0
        %554 = vmatpush1.bf16.xpose.msra.mxu0 0
        %555 = vmatprep.subr.bf16.mxu0 0
        %556 = vmatpush1.bf16.xpose.msra.mxu0 0
        %557 = vmatprep.mubr.bf16.mxu0 0
        %558 = vmatmul.mubr.bf16.gmra.mrb[0].mxu0 %v520
        %v559 = vpop.f32.mrb[0].mxu0
        %v560 = vadd.f32 0.0, %v559
        %v561 = vpop.f32.mrb[0].mxu0
        %v562 = vpop.f32.mrb[0].mxu0
        %v563 = vpop.f32.mrb[0].mxu0
        %564 = vdwg.mxu0
        %566 = vrot.lane.b32.xlu0 %v364, 112
        %v567 = vpop.permute.xlu0 %566
        %v569 = vsel %vm371, %v336, 0
        %v572 = vsel %vm371, %v567, 0
        %574 = vmatprep.subr.bf16.mxu0 0
        %575 = vmatpush1.bf16.xpose.msra.mxu0 %v572
        %576 = vmatprep.subr.bf16.mxu0 0
        %577 = vmatpush1.bf16.xpose.msra.mxu0 0
        %578 = vmatprep.subr.bf16.mxu0 0
        %579 = vmatpush1.bf16.xpose.msra.mxu0 0
        %580 = vmatprep.subr.bf16.mxu0 0
        %581 = vmatpush1.bf16.xpose.msra.mxu0 0
        %582 = vmatprep.subr.bf16.mxu0 0
        %583 = vmatpush1.bf16.xpose.msra.mxu0 0
        %584 = vmatprep.subr.bf16.mxu0 0
        %585 = vmatpush1.bf16.xpose.msra.mxu0 0
        %586 = vmatprep.subr.bf16.mxu0 0
        %587 = vmatpush1.bf16.xpose.msra.mxu0 0
        %588 = vmatprep.subr.bf16.mxu0 0
        %589 = vmatpush1.bf16.xpose.msra.mxu0 0
        %590 = vmatprep.subr.bf16.mxu0 0
        %591 = vmatpush1.bf16.xpose.msra.mxu0 0
        %592 = vmatprep.subr.bf16.mxu0 0
        %593 = vmatpush1.bf16.xpose.msra.mxu0 0
        %594 = vmatprep.subr.bf16.mxu0 0
        %595 = vmatpush1.bf16.xpose.msra.mxu0 0
        %596 = vmatprep.subr.bf16.mxu0 0
        %597 = vmatpush1.bf16.xpose.msra.mxu0 0
        %598 = vmatprep.subr.bf16.mxu0 0
        %599 = vmatpush1.bf16.xpose.msra.mxu0 0
        %600 = vmatprep.subr.bf16.mxu0 0
        %601 = vmatpush1.bf16.xpose.msra.mxu0 0
        %602 = vmatprep.subr.bf16.mxu0 0
        %603 = vmatpush1.bf16.xpose.msra.mxu0 0
        %604 = vmatprep.subr.bf16.mxu0 0
        %605 = vmatpush1.bf16.xpose.msra.mxu0 0
        %606 = vmatprep.mubr.bf16.mxu0 0
        %607 = vmatmul.mubr.bf16.gmra.mrb[0].mxu0 %v569
        %v608 = vpop.f32.mrb[0].mxu0
        %v609 = vadd.f32 0.0, %v608
        %v610 = vpop.f32.mrb[0].mxu0
        %v611 = vpop.f32.mrb[0].mxu0
        %v612 = vpop.f32.mrb[0].mxu0
        %613 = vdwg.mxu0
        %615 = vrot.lane.b32.xlu0 %v365, 112
        %v616 = vpop.permute.xlu0 %615
        %v618 = vsel %vm371, %v337, 0
        %v621 = vsel %vm371, %v616, 0
        %623 = vmatprep.subr.bf16.mxu0 0
        %624 = vmatpush1.bf16.xpose.msra.mxu0 %v621
        %625 = vmatprep.subr.bf16.mxu0 0
        %626 = vmatpush1.bf16.xpose.msra.mxu0 0
        %627 = vmatprep.subr.bf16.mxu0 0
        %628 = vmatpush1.bf16.xpose.msra.mxu0 0
        %629 = vmatprep.subr.bf16.mxu0 0
        %630 = vmatpush1.bf16.xpose.msra.mxu0 0
        %631 = vmatprep.subr.bf16.mxu0 0
        %632 = vmatpush1.bf16.xpose.msra.mxu0 0
        %633 = vmatprep.subr.bf16.mxu0 0
        %634 = vmatpush1.bf16.xpose.msra.mxu0 0
        %635 = vmatprep.subr.bf16.mxu0 0
        %636 = vmatpush1.bf16.xpose.msra.mxu0 0
        %637 = vmatprep.subr.bf16.mxu0 0
        %638 = vmatpush1.bf16.xpose.msra.mxu0 0
        %639 = vmatprep.subr.bf16.mxu0 0
        %640 = vmatpush1.bf16.xpose.msra.mxu0 0
        %641 = vmatprep.subr.bf16.mxu0 0
        %642 = vmatpush1.bf16.xpose.msra.mxu0 0
        %643 = vmatprep.subr.bf16.mxu0 0
        %644 = vmatpush1.bf16.xpose.msra.mxu0 0
        %645 = vmatprep.subr.bf16.mxu0 0
        %646 = vmatpush1.bf16.xpose.msra.mxu0 0
        %647 = vmatprep.subr.bf16.mxu0 0
        %648 = vmatpush1.bf16.xpose.msra.mxu0 0
        %649 = vmatprep.subr.bf16.mxu0 0
        %650 = vmatpush1.bf16.xpose.msra.mxu0 0
        %651 = vmatprep.subr.bf16.mxu0 0
        %652 = vmatpush1.bf16.xpose.msra.mxu0 0
        %653 = vmatprep.subr.bf16.mxu0 0
        %654 = vmatpush1.bf16.xpose.msra.mxu0 0
        %655 = vmatprep.mubr.bf16.mxu0 0
        %656 = vmatmul.mubr.bf16.gmra.mrb[0].mxu0 %v618
        %v657 = vpop.f32.mrb[0].mxu0
        %v658 = vadd.f32 0.0, %v657
        %v659 = vpop.f32.mrb[0].mxu0
        %v660 = vpop.f32.mrb[0].mxu0
        %v661 = vpop.f32.mrb[0].mxu0
        %662 = vdwg.mxu0
        %664 = vrot.lane.b32.xlu0 %v366, 112
        %v665 = vpop.permute.xlu0 %664
        %v667 = vsel %vm371, %v338, 0
        %v670 = vsel %vm371, %v665, 0
        %672 = vmatprep.subr.bf16.mxu0 0
        %673 = vmatpush1.bf16.xpose.msra.mxu0 %v670
        %674 = vmatprep.subr.bf16.mxu0 0
        %675 = vmatpush1.bf16.xpose.msra.mxu0 0
        %676 = vmatprep.subr.bf16.mxu0 0
        %677 = vmatpush1.bf16.xpose.msra.mxu0 0
        %678 = vmatprep.subr.bf16.mxu0 0
        %679 = vmatpush1.bf16.xpose.msra.mxu0 0
        %680 = vmatprep.subr.bf16.mxu0 0
        %681 = vmatpush1.bf16.xpose.msra.mxu0 0
        %682 = vmatprep.subr.bf16.mxu0 0
        %683 = vmatpush1.bf16.xpose.msra.mxu0 0
        %684 = vmatprep.subr.bf16.mxu0 0
        %685 = vmatpush1.bf16.xpose.msra.mxu0 0
        %686 = vmatprep.subr.bf16.mxu0 0
        %687 = vmatpush1.bf16.xpose.msra.mxu0 0
        %688 = vmatprep.subr.bf16.mxu0 0
        %689 = vmatpush1.bf16.xpose.msra.mxu0 0
        %690 = vmatprep.subr.bf16.mxu0 0
        %691 = vmatpush1.bf16.xpose.msra.mxu0 0
        %692 = vmatprep.subr.bf16.mxu0 0
        %693 = vmatpush1.bf16.xpose.msra.mxu0 0
        %694 = vmatprep.subr.bf16.mxu0 0
        %695 = vmatpush1.bf16.xpose.msra.mxu0 0
        %696 = vmatprep.subr.bf16.mxu0 0
        %697 = vmatpush1.bf16.xpose.msra.mxu0 0
        %698 = vmatprep.subr.bf16.mxu0 0
        %699 = vmatpush1.bf16.xpose.msra.mxu0 0
        %700 = vmatprep.subr.bf16.mxu0 0
        %701 = vmatpush1.bf16.xpose.msra.mxu0 0
        %702 = vmatprep.subr.bf16.mxu0 0
        %703 = vmatpush1.bf16.xpose.msra.mxu0 0
        %704 = vmatprep.mubr.bf16.mxu0 0
        %705 = vmatmul.mubr.bf16.gmra.mrb[0].mxu0 %v667
        %v706 = vpop.f32.mrb[0].mxu0
        %v707 = vadd.f32 0.0, %v706
        %v708 = vpop.f32.mrb[0].mxu0
        %v709 = vpop.f32.mrb[0].mxu0
        %v710 = vpop.f32.mrb[0].mxu0
        %711 = vdwg.mxu0
        %713 = vrot.lane.b32.xlu0 %v367, 112
        %v714 = vpop.permute.xlu0 %713
        %v716 = vsel %vm371, %v339, 0
        %v719 = vsel %vm371, %v714, 0
        %721 = vmatprep.subr.bf16.mxu0 0
        %722 = vmatpush1.bf16.xpose.msra.mxu0 %v719
        %723 = vmatprep.subr.bf16.mxu0 0
        %724 = vmatpush1.bf16.xpose.msra.mxu0 0
        %725 = vmatprep.subr.bf16.mxu0 0
        %726 = vmatpush1.bf16.xpose.msra.mxu0 0
        %727 = vmatprep.subr.bf16.mxu0 0
        %728 = vmatpush1.bf16.xpose.msra.mxu0 0
        %729 = vmatprep.subr.bf16.mxu0 0
        %730 = vmatpush1.bf16.xpose.msra.mxu0 0
        %731 = vmatprep.subr.bf16.mxu0 0
        %732 = vmatpush1.bf16.xpose.msra.mxu0 0
        %733 = vmatprep.subr.bf16.mxu0 0
        %734 = vmatpush1.bf16.xpose.msra.mxu0 0
        %735 = vmatprep.subr.bf16.mxu0 0
        %736 = vmatpush1.bf16.xpose.msra.mxu0 0
        %737 = vmatprep.subr.bf16.mxu0 0
        %738 = vmatpush1.bf16.xpose.msra.mxu0 0
        %739 = vmatprep.subr.bf16.mxu0 0
        %740 = vmatpush1.bf16.xpose.msra.mxu0 0
        %741 = vmatprep.subr.bf16.mxu0 0
        %742 = vmatpush1.bf16.xpose.msra.mxu0 0
        %743 = vmatprep.subr.bf16.mxu0 0
        %744 = vmatpush1.bf16.xpose.msra.mxu0 0
        %745 = vmatprep.subr.bf16.mxu0 0
        %746 = vmatpush1.bf16.xpose.msra.mxu0 0
        %747 = vmatprep.subr.bf16.mxu0 0
        %748 = vmatpush1.bf16.xpose.msra.mxu0 0
        %749 = vmatprep.subr.bf16.mxu0 0
        %750 = vmatpush1.bf16.xpose.msra.mxu0 0
        %751 = vmatprep.subr.bf16.mxu0 0
        %752 = vmatpush1.bf16.xpose.msra.mxu0 0
        %753 = vmatprep.mubr.bf16.mxu0 0
        %754 = vmatmul.mubr.bf16.gmra.mrb[0].mxu0 %v716
        %v755 = vpop.f32.mrb[0].mxu0
        %v756 = vadd.f32 0.0, %v755
        %v757 = vpop.f32.mrb[0].mxu0
        %v758 = vpop.f32.mrb[0].mxu0
        %v759 = vpop.f32.mrb[0].mxu0
        %760 = vdwg.mxu0
        %vm761 = vcmask 64512
        %v762 = vsel %vm761, %v413, -inf
        %763 = vmax.xlane.f32.xlu0 %v762
        %v764 = vpop.xlane.xlu0 %763
        %v765 = vsel %vm761, %v462, -inf
        %766 = vmax.xlane.f32.xlu0 %v765
        %v767 = vpop.xlane.xlu0 %766
        %v768 = vsel %vm761, %v511, -inf
        %769 = vmax.xlane.f32.xlu0 %v768
        %v770 = vpop.xlane.xlu0 %769
        %v771 = vsel %vm761, %v560, -inf
        %772 = vmax.xlane.f32.xlu0 %v771
        %v773 = vpop.xlane.xlu0 %772
        %v774 = vsel %vm761, %v609, -inf
        %775 = vmax.xlane.f32.xlu0 %v774
        %v776 = vpop.xlane.xlu0 %775
        %v777 = vsel %vm761, %v658, -inf
        %778 = vmax.xlane.f32.xlu0 %v777
        %v779 = vpop.xlane.xlu0 %778
        %v780 = vsel %vm761, %v707, -inf
        %781 = vmax.xlane.f32.xlu0 %v780
        %v782 = vpop.xlane.xlu0 %781
        %v783 = vsel %vm761, %v756, -inf
        %784 = vmax.xlane.f32.xlu0 %v783
        %v785 = vpop.xlane.xlu0 %784
        %v786 = vsub.f32 %v413, %v764
        %v787 = vsub.f32 %v462, %v767
        %v788 = vsub.f32 %v511, %v770
        %v789 = vsub.f32 %v560, %v773
        %v790 = vsub.f32 %v609, %v776
        %v791 = vsub.f32 %v658, %v779
        %v792 = vsub.f32 %v707, %v782
        %v793 = vsub.f32 %v756, %v785
        %v794 = vmul.f32 %v786, 1.442695
        %v795 = vpow.pop %v794
        %v796 = vmul.f32 %v787, 1.442695
        %v797 = vpow.pop %v796
        %v798 = vmul.f32 %v788, 1.442695
        %v799 = vpow.pop %v798
        %v800 = vmul.f32 %v789, 1.442695
        %v801 = vpow.pop %v800
        %v802 = vmul.f32 %v790, 1.442695
        %v803 = vpow.pop %v802
        %v804 = vmul.f32 %v791, 1.442695
        %v805 = vpow.pop %v804
        %v806 = vmul.f32 %v792, 1.442695
        %v807 = vpow.pop %v806
        %v808 = vmul.f32 %v793, 1.442695
        %v809 = vpow.pop %v808
        %v810 = vsel %vm761, %v795, 0.0
        %811 = vadd.xlane.f32.xlu0 %v810
        %v812 = vpop.xlane.xlu0 %811
        %v813 = vsel %vm761, %v797, 0.0
        %814 = vadd.xlane.f32.xlu0 %v813
        %v815 = vpop.xlane.xlu0 %814
        %v816 = vsel %vm761, %v799, 0.0
        %817 = vadd.xlane.f32.xlu0 %v816
        %v818 = vpop.xlane.xlu0 %817
        %v819 = vsel %vm761, %v801, 0.0
        %820 = vadd.xlane.f32.xlu0 %v819
        %v821 = vpop.xlane.xlu0 %820
        %v822 = vsel %vm761, %v803, 0.0
        %823 = vadd.xlane.f32.xlu0 %v822
        %v824 = vpop.xlane.xlu0 %823
        %v825 = vsel %vm761, %v805, 0.0
        %826 = vadd.xlane.f32.xlu0 %v825
        %v827 = vpop.xlane.xlu0 %826
        %v828 = vsel %vm761, %v807, 0.0
        %829 = vadd.xlane.f32.xlu0 %v828
        %v830 = vpop.xlane.xlu0 %829
        %v831 = vsel %vm761, %v809, 0.0
        %832 = vadd.xlane.f32.xlu0 %v831
        %v833 = vpop.xlane.xlu0 %832
        %v834 = vrcp.pop %v812
        %v835 = vmul.f32 %v795, %v834
        %v836 = vrcp.pop %v815
        %v837 = vmul.f32 %v797, %v836
        %v838 = vrcp.pop %v818
        %v839 = vmul.f32 %v799, %v838
        %v840 = vrcp.pop %v821
        %v841 = vmul.f32 %v801, %v840
        %v842 = vrcp.pop %v824
        %v843 = vmul.f32 %v803, %v842
        %v844 = vrcp.pop %v827
        %v845 = vmul.f32 %v805, %v844
        %v846 = vrcp.pop %v830
        %v847 = vmul.f32 %v807, %v846
        %v848 = vrcp.pop %v833
        %v849 = vmul.f32 %v809, %v848
        %850 = vst.msk [vmem:[%s216] sm:$0xff] %vm761, %v835
        %851 = vst.msk [vmem:[%s216 + $0x8] sm:$0xff] %vm761, %v837
        %852 = vst.msk [vmem:[%s216 + $0x10] sm:$0xff] %vm761, %v839
        %853 = vst.msk [vmem:[%s216 + $0x18] sm:$0xff] %vm761, %v841
        %854 = vst.msk [vmem:[%s216 + $0x20] sm:$0xff] %vm761, %v843
        %855 = vst.msk [vmem:[%s216 + $0x28] sm:$0xff] %vm761, %v845
        %856 = vst.msk [vmem:[%s216 + $0x30] sm:$0xff] %vm761, %v847
        %857 = vst.msk [vmem:[%s216 + $0x38] sm:$0xff] %vm761, %v849
        %v858 = vpack.c.bf16 %v835, %v835
        %v859 = vpack.c.bf16 %v837, %v837
        %v860 = vpack.c.bf16 %v839, %v839
        %v861 = vpack.c.bf16 %v841, %v841
        %v862 = vpack.c.bf16 %v843, %v843
        %v863 = vpack.c.bf16 %v845, %v845
        %v864 = vpack.c.bf16 %v847, %v847
        %v865 = vpack.c.bf16 %v849, %v849
        %866 = vrot.lane.b32.xlu0 %v360, 96
        %v867 = vpop.permute.xlu0 %866
        %v869 = vsel %vm761, %v858, 0
        %vm871 = vcmask 1043456
        %v873 = vsel %vm871, %v867, 0
        %875 = vmatprep.subr.bf16.mxu0 0
        %876 = vmatpush1.bf16.msra.mxu0 %v873
        %877 = vmatprep.subr.bf16.mxu0 0
        %878 = vmatpush1.bf16.msra.mxu0 0
        %879 = vmatprep.subr.bf16.mxu0 0
        %880 = vmatpush1.bf16.msra.mxu0 0
        %881 = vmatprep.subr.bf16.mxu0 0
        %882 = vmatpush1.bf16.msra.mxu0 0
        %883 = vmatprep.subr.bf16.mxu0 0
        %884 = vmatpush1.bf16.msra.mxu0 0
        %885 = vmatprep.subr.bf16.mxu0 0
        %886 = vmatpush1.bf16.msra.mxu0 0
        %887 = vmatprep.subr.bf16.mxu0 0
        %888 = vmatpush1.bf16.msra.mxu0 0
        %889 = vmatprep.subr.bf16.mxu0 0
        %890 = vmatpush1.bf16.msra.mxu0 0
        %891 = vmatprep.subr.bf16.mxu0 0
        %892 = vmatpush1.bf16.msra.mxu0 0
        %893 = vmatprep.subr.bf16.mxu0 0
        %894 = vmatpush1.bf16.msra.mxu0 0
        %895 = vmatprep.subr.bf16.mxu0 0
        %896 = vmatpush1.bf16.msra.mxu0 0
        %897 = vmatprep.subr.bf16.mxu0 0
        %898 = vmatpush1.bf16.msra.mxu0 0
        %899 = vmatprep.subr.bf16.mxu0 0
        %900 = vmatpush1.bf16.msra.mxu0 0
        %901 = vmatprep.subr.bf16.mxu0 0
        %902 = vmatpush1.bf16.msra.mxu0 0
        %903 = vmatprep.subr.bf16.mxu0 0
        %904 = vmatpush1.bf16.msra.mxu0 0
        %905 = vmatprep.subr.bf16.mxu0 0
        %906 = vmatpush1.bf16.msra.mxu0 0
        %907 = vmatprep.mubr.bf16.mxu0 0
        %908 = vmatmul.mubr.bf16.gmra.mrb[0].mxu0 %v869
        %v909 = vpop.f32.mrb[0].mxu0
        %v910 = vadd.f32 0.0, %v909
        %v911 = vpop.f32.mrb[0].mxu0
        %v912 = vpop.f32.mrb[0].mxu0
        %v913 = vpop.f32.mrb[0].mxu0
        %914 = vdwg.mxu0
        %915 = vrot.lane.b32.xlu0 %v361, 96
        %v916 = vpop.permute.xlu0 %915
        %v918 = vsel %vm761, %v859, 0
        %v921 = vsel %vm871, %v916, 0
        %923 = vmatprep.subr.bf16.mxu0 0
        %924 = vmatpush1.bf16.msra.mxu0 %v921
        %925 = vmatprep.subr.bf16.mxu0 0
        %926 = vmatpush1.bf16.msra.mxu0 0
        %927 = vmatprep.subr.bf16.mxu0 0
        %928 = vmatpush1.bf16.msra.mxu0 0
        %929 = vmatprep.subr.bf16.mxu0 0
        %930 = vmatpush1.bf16.msra.mxu0 0
        %931 = vmatprep.subr.bf16.mxu0 0
        %932 = vmatpush1.bf16.msra.mxu0 0
        %933 = vmatprep.subr.bf16.mxu0 0
        %934 = vmatpush1.bf16.msra.mxu0 0
        %935 = vmatprep.subr.bf16.mxu0 0
        %936 = vmatpush1.bf16.msra.mxu0 0
        %937 = vmatprep.subr.bf16.mxu0 0
        %938 = vmatpush1.bf16.msra.mxu0 0
        %939 = vmatprep.subr.bf16.mxu0 0
        %940 = vmatpush1.bf16.msra.mxu0 0
        %941 = vmatprep.subr.bf16.mxu0 0
        %942 = vmatpush1.bf16.msra.mxu0 0
        %943 = vmatprep.subr.bf16.mxu0 0
        %944 = vmatpush1.bf16.msra.mxu0 0
        %945 = vmatprep.subr.bf16.mxu0 0
        %946 = vmatpush1.bf16.msra.mxu0 0
        %947 = vmatprep.subr.bf16.mxu0 0
        %948 = vmatpush1.bf16.msra.mxu0 0
        %949 = vmatprep.subr.bf16.mxu0 0
        %950 = vmatpush1.bf16.msra.mxu0 0
        %951 = vmatprep.subr.bf16.mxu0 0
        %952 = vmatpush1.bf16.msra.mxu0 0
        %953 = vmatprep.subr.bf16.mxu0 0
        %954 = vmatpush1.bf16.msra.mxu0 0
        %955 = vmatprep.mubr.bf16.mxu0 0
        %956 = vmatmul.mubr.bf16.gmra.mrb[0].mxu0 %v918
        %v957 = vpop.f32.mrb[0].mxu0
        %v958 = vadd.f32 0.0, %v957
        %v959 = vpop.f32.mrb[0].mxu0
        %v960 = vpop.f32.mrb[0].mxu0
        %v961 = vpop.f32.mrb[0].mxu0
        %962 = vdwg.mxu0
        %963 = vrot.lane.b32.xlu0 %v362, 96
        %v964 = vpop.permute.xlu0 %963
        %v966 = vsel %vm761, %v860, 0
        %v969 = vsel %vm871, %v964, 0
        %971 = vmatprep.subr.bf16.mxu0 0
        %972 = vmatpush1.bf16.msra.mxu0 %v969
        %973 = vmatprep.subr.bf16.mxu0 0
        %974 = vmatpush1.bf16.msra.mxu0 0
        %975 = vmatprep.subr.bf16.mxu0 0
        %976 = vmatpush1.bf16.msra.mxu0 0
        %977 = vmatprep.subr.bf16.mxu0 0
        %978 = vmatpush1.bf16.msra.mxu0 0
        %979 = vmatprep.subr.bf16.mxu0 0
        %980 = vmatpush1.bf16.msra.mxu0 0
        %981 = vmatprep.subr.bf16.mxu0 0
        %982 = vmatpush1.bf16.msra.mxu0 0
        %983 = vmatprep.subr.bf16.mxu0 0
        %984 = vmatpush1.bf16.msra.mxu0 0
        %985 = vmatprep.subr.bf16.mxu0 0
        %986 = vmatpush1.bf16.msra.mxu0 0
        %987 = vmatprep.subr.bf16.mxu0 0
        %988 = vmatpush1.bf16.msra.mxu0 0
        %989 = vmatprep.subr.bf16.mxu0 0
        %990 = vmatpush1.bf16.msra.mxu0 0
        %991 = vmatprep.subr.bf16.mxu0 0
        %992 = vmatpush1.bf16.msra.mxu0 0
        %993 = vmatprep.subr.bf16.mxu0 0
        %994 = vmatpush1.bf16.msra.mxu0 0
        %995 = vmatprep.subr.bf16.mxu0 0
        %996 = vmatpush1.bf16.msra.mxu0 0
        %997 = vmatprep.subr.bf16.mxu0 0
        %998 = vmatpush1.bf16.msra.mxu0 0
        %999 = vmatprep.subr.bf16.mxu0 0
        %1000 = vmatpush1.bf16.msra.mxu0 0
        %1001 = vmatprep.subr.bf16.mxu0 0
        %1002 = vmatpush1.bf16.msra.mxu0 0
        %1003 = vmatprep.mubr.bf16.mxu0 0
        %1004 = vmatmul.mubr.bf16.gmra.mrb[0].mxu0 %v966
        %v1005 = vpop.f32.mrb[0].mxu0
        %v1006 = vadd.f32 0.0, %v1005
        %v1007 = vpop.f32.mrb[0].mxu0
        %v1008 = vpop.f32.mrb[0].mxu0
        %v1009 = vpop.f32.mrb[0].mxu0
        %1010 = vdwg.mxu0
        %1011 = vrot.lane.b32.xlu0 %v363, 96
        %v1012 = vpop.permute.xlu0 %1011
        %v1014 = vsel %vm761, %v861, 0
        %v1017 = vsel %vm871, %v1012, 0
        %1019 = vmatprep.subr.bf16.mxu0 0
        %1020 = vmatpush1.bf16.msra.mxu0 %v1017
        %1021 = vmatprep.subr.bf16.mxu0 0
        %1022 = vmatpush1.bf16.msra.mxu0 0
        %1023 = vmatprep.subr.bf16.mxu0 0
        %1024 = vmatpush1.bf16.msra.mxu0 0
        %1025 = vmatprep.subr.bf16.mxu0 0
        %1026 = vmatpush1.bf16.msra.mxu0 0
        %1027 = vmatprep.subr.bf16.mxu0 0
        %1028 = vmatpush1.bf16.msra.mxu0 0
        %1029 = vmatprep.subr.bf16.mxu0 0
        %1030 = vmatpush1.bf16.msra.mxu0 0
        %1031 = vmatprep.subr.bf16.mxu0 0
        %1032 = vmatpush1.bf16.msra.mxu0 0
        %1033 = vmatprep.subr.bf16.mxu0 0
        %1034 = vmatpush1.bf16.msra.mxu0 0
        %1035 = vmatprep.subr.bf16.mxu0 0
        %1036 = vmatpush1.bf16.msra.mxu0 0
        %1037 = vmatprep.subr.bf16.mxu0 0
        %1038 = vmatpush1.bf16.msra.mxu0 0
        %1039 = vmatprep.subr.bf16.mxu0 0
        %1040 = vmatpush1.bf16.msra.mxu0 0
        %1041 = vmatprep.subr.bf16.mxu0 0
        %1042 = vmatpush1.bf16.msra.mxu0 0
        %1043 = vmatprep.subr.bf16.mxu0 0
        %1044 = vmatpush1.bf16.msra.mxu0 0
        %1045 = vmatprep.subr.bf16.mxu0 0
        %1046 = vmatpush1.bf16.msra.mxu0 0
        %1047 = vmatprep.subr.bf16.mxu0 0
        %1048 = vmatpush1.bf16.msra.mxu0 0
        %1049 = vmatprep.subr.bf16.mxu0 0
        %1050 = vmatpush1.bf16.msra.mxu0 0
        %1051 = vmatprep.mubr.bf16.mxu0 0
        %1052 = vmatmul.mubr.bf16.gmra.mrb[0].mxu0 %v1014
        %v1053 = vpop.f32.mrb[0].mxu0
        %v1054 = vadd.f32 0.0, %v1053
        %v1055 = vpop.f32.mrb[0].mxu0
        %v1056 = vpop.f32.mrb[0].mxu0
        %v1057 = vpop.f32.mrb[0].mxu0
        %1058 = vdwg.mxu0
        %1059 = vrot.lane.b32.xlu0 %v364, 96
        %v1060 = vpop.permute.xlu0 %1059
        %v1062 = vsel %vm761, %v862, 0
        %v1065 = vsel %vm871, %v1060, 0
        %1067 = vmatprep.subr.bf16.mxu0 0
        %1068 = vmatpush1.bf16.msra.mxu0 %v1065
        %1069 = vmatprep.subr.bf16.mxu0 0
        %1070 = vmatpush1.bf16.msra.mxu0 0
        %1071 = vmatprep.subr.bf16.mxu0 0
        %1072 = vmatpush1.bf16.msra.mxu0 0
        %1073 = vmatprep.subr.bf16.mxu0 0
        %1074 = vmatpush1.bf16.msra.mxu0 0
        %1075 = vmatprep.subr.bf16.mxu0 0
        %1076 = vmatpush1.bf16.msra.mxu0 0
        %1077 = vmatprep.subr.bf16.mxu0 0
        %1078 = vmatpush1.bf16.msra.mxu0 0
        %1079 = vmatprep.subr.bf16.mxu0 0
        %1080 = vmatpush1.bf16.msra.mxu0 0
        %1081 = vmatprep.subr.bf16.mxu0 0
        %1082 = vmatpush1.bf16.msra.mxu0 0
        %1083 = vmatprep.subr.bf16.mxu0 0
        %1084 = vmatpush1.bf16.msra.mxu0 0
        %1085 = vmatprep.subr.bf16.mxu0 0
        %1086 = vmatpush1.bf16.msra.mxu0 0
        %1087 = vmatprep.subr.bf16.mxu0 0
        %1088 = vmatpush1.bf16.msra.mxu0 0
        %1089 = vmatprep.subr.bf16.mxu0 0
        %1090 = vmatpush1.bf16.msra.mxu0 0
        %1091 = vmatprep.subr.bf16.mxu0 0
        %1092 = vmatpush1.bf16.msra.mxu0 0
        %1093 = vmatprep.subr.bf16.mxu0 0
        %1094 = vmatpush1.bf16.msra.mxu0 0
        %1095 = vmatprep.subr.bf16.mxu0 0
        %1096 = vmatpush1.bf16.msra.mxu0 0
        %1097 = vmatprep.subr.bf16.mxu0 0
        %1098 = vmatpush1.bf16.msra.mxu0 0
        %1099 = vmatprep.mubr.bf16.mxu0 0
        %1100 = vmatmul.mubr.bf16.gmra.mrb[0].mxu0 %v1062
        %v1101 = vpop.f32.mrb[0].mxu0
        %v1102 = vadd.f32 0.0, %v1101
        %v1103 = vpop.f32.mrb[0].mxu0
        %v1104 = vpop.f32.mrb[0].mxu0
        %v1105 = vpop.f32.mrb[0].mxu0
        %1106 = vdwg.mxu0
        %1107 = vrot.lane.b32.xlu0 %v365, 96
        %v1108 = vpop.permute.xlu0 %1107
        %v1110 = vsel %vm761, %v863, 0
        %v1113 = vsel %vm871, %v1108, 0
        %1115 = vmatprep.subr.bf16.mxu0 0
        %1116 = vmatpush1.bf16.msra.mxu0 %v1113
        %1117 = vmatprep.subr.bf16.mxu0 0
        %1118 = vmatpush1.bf16.msra.mxu0 0
        %1119 = vmatprep.subr.bf16.mxu0 0
        %1120 = vmatpush1.bf16.msra.mxu0 0
        %1121 = vmatprep.subr.bf16.mxu0 0
        %1122 = vmatpush1.bf16.msra.mxu0 0
        %1123 = vmatprep.subr.bf16.mxu0 0
        %1124 = vmatpush1.bf16.msra.mxu0 0
        %1125 = vmatprep.subr.bf16.mxu0 0
        %1126 = vmatpush1.bf16.msra.mxu0 0
        %1127 = vmatprep.subr.bf16.mxu0 0
        %1128 = vmatpush1.bf16.msra.mxu0 0
        %1129 = vmatprep.subr.bf16.mxu0 0
        %1130 = vmatpush1.bf16.msra.mxu0 0
        %1131 = vmatprep.subr.bf16.mxu0 0
        %1132 = vmatpush1.bf16.msra.mxu0 0
        %1133 = vmatprep.subr.bf16.mxu0 0
        %1134 = vmatpush1.bf16.msra.mxu0 0
        %1135 = vmatprep.subr.bf16.mxu0 0
        %1136 = vmatpush1.bf16.msra.mxu0 0
        %1137 = vmatprep.subr.bf16.mxu0 0
        %1138 = vmatpush1.bf16.msra.mxu0 0
        %1139 = vmatprep.subr.bf16.mxu0 0
        %1140 = vmatpush1.bf16.msra.mxu0 0
        %1141 = vmatprep.subr.bf16.mxu0 0
        %1142 = vmatpush1.bf16.msra.mxu0 0
        %1143 = vmatprep.subr.bf16.mxu0 0
        %1144 = vmatpush1.bf16.msra.mxu0 0
        %1145 = vmatprep.subr.bf16.mxu0 0
        %1146 = vmatpush1.bf16.msra.mxu0 0
        %1147 = vmatprep.mubr.bf16.mxu0 0
        %1148 = vmatmul.mubr.bf16.gmra.mrb[0].mxu0 %v1110
        %v1149 = vpop.f32.mrb[0].mxu0
        %v1150 = vadd.f32 0.0, %v1149
        %v1151 = vpop.f32.mrb[0].mxu0
        %v1152 = vpop.f32.mrb[0].mxu0
        %v1153 = vpop.f32.mrb[0].mxu0
        %1154 = vdwg.mxu0
        %1155 = vrot.lane.b32.xlu0 %v366, 96
        %v1156 = vpop.permute.xlu0 %1155
        %v1158 = vsel %vm761, %v864, 0
        %v1161 = vsel %vm871, %v1156, 0
        %1163 = vmatprep.subr.bf16.mxu0 0
        %1164 = vmatpush1.bf16.msra.mxu0 %v1161
        %1165 = vmatprep.subr.bf16.mxu0 0
        %1166 = vmatpush1.bf16.msra.mxu0 0
        %1167 = vmatprep.subr.bf16.mxu0 0
        %1168 = vmatpush1.bf16.msra.mxu0 0
        %1169 = vmatprep.subr.bf16.mxu0 0
        %1170 = vmatpush1.bf16.msra.mxu0 0
        %1171 = vmatprep.subr.bf16.mxu0 0
        %1172 = vmatpush1.bf16.msra.mxu0 0
        %1173 = vmatprep.subr.bf16.mxu0 0
        %1174 = vmatpush1.bf16.msra.mxu0 0
        %1175 = vmatprep.subr.bf16.mxu0 0
        %1176 = vmatpush1.bf16.msra.mxu0 0
        %1177 = vmatprep.subr.bf16.mxu0 0
        %1178 = vmatpush1.bf16.msra.mxu0 0
        %1179 = vmatprep.subr.bf16.mxu0 0
        %1180 = vmatpush1.bf16.msra.mxu0 0
        %1181 = vmatprep.subr.bf16.mxu0 0
        %1182 = vmatpush1.bf16.msra.mxu0 0
        %1183 = vmatprep.subr.bf16.mxu0 0
        %1184 = vmatpush1.bf16.msra.mxu0 0
        %1185 = vmatprep.subr.bf16.mxu0 0
        %1186 = vmatpush1.bf16.msra.mxu0 0
        %1187 = vmatprep.subr.bf16.mxu0 0
        %1188 = vmatpush1.bf16.msra.mxu0 0
        %1189 = vmatprep.subr.bf16.mxu0 0
        %1190 = vmatpush1.bf16.msra.mxu0 0
        %1191 = vmatprep.subr.bf16.mxu0 0
        %1192 = vmatpush1.bf16.msra.mxu0 0
        %1193 = vmatprep.subr.bf16.mxu0 0
        %1194 = vmatpush1.bf16.msra.mxu0 0
        %1195 = vmatprep.mubr.bf16.mxu0 0
        %1196 = vmatmul.mubr.bf16.gmra.mrb[0].mxu0 %v1158
        %v1197 = vpop.f32.mrb[0].mxu0
        %v1198 = vadd.f32 0.0, %v1197
        %v1199 = vpop.f32.mrb[0].mxu0
        %v1200 = vpop.f32.mrb[0].mxu0
        %v1201 = vpop.f32.mrb[0].mxu0
        %1202 = vdwg.mxu0
        %1203 = vrot.lane.b32.xlu0 %v367, 96
        %v1204 = vpop.permute.xlu0 %1203
        %v1206 = vsel %vm761, %v865, 0
        %v1209 = vsel %vm871, %v1204, 0
        %1211 = vmatprep.subr.bf16.mxu0 0
        %1212 = vmatpush1.bf16.msra.mxu0 %v1209
        %1213 = vmatprep.subr.bf16.mxu0 0
        %1214 = vmatpush1.bf16.msra.mxu0 0
        %1215 = vmatprep.subr.bf16.mxu0 0
        %1216 = vmatpush1.bf16.msra.mxu0 0
        %1217 = vmatprep.subr.bf16.mxu0 0
        %1218 = vmatpush1.bf16.msra.mxu0 0
        %1219 = vmatprep.subr.bf16.mxu0 0
        %1220 = vmatpush1.bf16.msra.mxu0 0
        %1221 = vmatprep.subr.bf16.mxu0 0
        %1222 = vmatpush1.bf16.msra.mxu0 0
        %1223 = vmatprep.subr.bf16.mxu0 0
        %1224 = vmatpush1.bf16.msra.mxu0 0
        %1225 = vmatprep.subr.bf16.mxu0 0
        %1226 = vmatpush1.bf16.msra.mxu0 0
        %1227 = vmatprep.subr.bf16.mxu0 0
        %1228 = vmatpush1.bf16.msra.mxu0 0
        %1229 = vmatprep.subr.bf16.mxu0 0
        %1230 = vmatpush1.bf16.msra.mxu0 0
        %1231 = vmatprep.subr.bf16.mxu0 0
        %1232 = vmatpush1.bf16.msra.mxu0 0
        %1233 = vmatprep.subr.bf16.mxu0 0
        %1234 = vmatpush1.bf16.msra.mxu0 0
        %1235 = vmatprep.subr.bf16.mxu0 0
        %1236 = vmatpush1.bf16.msra.mxu0 0
        %1237 = vmatprep.subr.bf16.mxu0 0
        %1238 = vmatpush1.bf16.msra.mxu0 0
        %1239 = vmatprep.subr.bf16.mxu0 0
        %1240 = vmatpush1.bf16.msra.mxu0 0
        %1241 = vmatprep.subr.bf16.mxu0 0
        %1242 = vmatpush1.bf16.msra.mxu0 0
        %1243 = vmatprep.mubr.bf16.mxu0 0
        %1244 = vmatmul.mubr.bf16.gmra.mrb[0].mxu0 %v1206
        %v1245 = vpop.f32.mrb[0].mxu0
        %v1246 = vadd.f32 0.0, %v1245
        %v1247 = vpop.f32.mrb[0].mxu0
        %v1248 = vpop.f32.mrb[0].mxu0
        %v1249 = vpop.f32.mrb[0].mxu0
        %1250 = vdwg.mxu0
        %1252 = vrot.lane.b32.xlu0 %v958, 4
        %v1253 = vpop.permute.xlu0 %1252
        %1256 = vrot.lane.b32.xlu0 %v1006, 8
        %v1257 = vpop.permute.xlu0 %1256
        %1260 = vrot.lane.b32.xlu0 %v1054, 12
        %v1261 = vpop.permute.xlu0 %1260
        %v1263 = vsel %vm371, %v910, %v1253
        %v1264 = vsel %vm761, %v1263, %v1257
        %vm1265 = vcmask 97280
        %v1266 = vsel %vm1265, %v1264, %v1261
        %1268 = vrot.lane.b32.xlu0 %v1150, 4
        %v1269 = vpop.permute.xlu0 %1268
        %1272 = vrot.lane.b32.xlu0 %v1198, 8
        %v1273 = vpop.permute.xlu0 %1272
        %1276 = vrot.lane.b32.xlu0 %v1246, 12
        %v1277 = vpop.permute.xlu0 %1276
        %v1279 = vsel %vm371, %v1102, %v1269
        %v1280 = vsel %vm761, %v1279, %v1273
        %v1281 = vsel %vm1265, %v1280, %v1277
        %v1282 = vpack.c.bf16 %v1281, %v1266
        %v1283 = vld [vmem:[%s226] sm:$0xf]
        %v1284 = vld [vmem:[%s226 + $0x4] sm:$0xf]
        %v1285 = vld [vmem:[%s226 + $0x8] sm:$0xf]
        %v1286 = vld [vmem:[%s226 + $0xc] sm:$0xf]
        %v1291 = vunpack.c.l.b16 %v1283
        %v1292 = vunpack.c.l.b16 %v1284
        %v1293 = vunpack.c.l.b16 %v1285
        %v1294 = vunpack.c.l.b16 %v1286
        %v1295 = vpack.c.b16 %v1292, %v1291
        %v1296 = vpack.c.b16 %v1294, %v1293
        %vm1297 = vcmask 130048
        %v1299 = vsel %vm1297, %v1282, 0
        %v1302 = vsel %vm1297, %v1295, 0
        %v1305 = vsel %vm1297, %v1296, 0
        %1307 = vmatprep.subr.bf16.mxu0 0
        %1308 = vmatpush1.bf16.xpose.msra.mxu0 %v1302
        %1309 = vmatprep.subr.bf16.mxu0 0
        %1310 = vmatpush1.bf16.xpose.msra.mxu0 %v1305
        %1311 = vmatprep.subr.bf16.mxu0 0
        %1312 = vmatpush1.bf16.xpose.msra.mxu0 0
        %1313 = vmatprep.subr.bf16.mxu0 0
        %1314 = vmatpush1.bf16.xpose.msra.mxu0 0
        %1315 = vmatprep.subr.bf16.mxu0 0
        %1316 = vmatpush1.bf16.xpose.msra.mxu0 0
        %1317 = vmatprep.subr.bf16.mxu0 0
        %1318 = vmatpush1.bf16.xpose.msra.mxu0 0
        %1319 = vmatprep.subr.bf16.mxu0 0
        %1320 = vmatpush1.bf16.xpose.msra.mxu0 0
        %1321 = vmatprep.subr.bf16.mxu0 0
        %1322 = vmatpush1.bf16.xpose.msra.mxu0 0
        %1323 = vmatprep.subr.bf16.mxu0 0
        %1324 = vmatpush1.bf16.xpose.msra.mxu0 0
        %1325 = vmatprep.subr.bf16.mxu0 0
        %1326 = vmatpush1.bf16.xpose.msra.mxu0 0
        %1327 = vmatprep.subr.bf16.mxu0 0
        %1328 = vmatpush1.bf16.xpose.msra.mxu0 0
        %1329 = vmatprep.subr.bf16.mxu0 0
        %1330 = vmatpush1.bf16.xpose.msra.mxu0 0
        %1331 = vmatprep.subr.bf16.mxu0 0
        %1332 = vmatpush1.bf16.xpose.msra.mxu0 0
        %1333 = vmatprep.subr.bf16.mxu0 0
        %1334 = vmatpush1.bf16.xpose.msra.mxu0 0
        %1335 = vmatprep.subr.bf16.mxu0 0
        %1336 = vmatpush1.bf16.xpose.msra.mxu0 0
        %1337 = vmatprep.subr.bf16.mxu0 0
        %1338 = vmatpush1.bf16.xpose.msra.mxu0 0
        %1339 = vmatprep.mubr.bf16.mxu0 0
        %1340 = vmatmul.mubr.bf16.gmra.mrb[0].mxu0 %v1299
        %v1341 = vpop.f32.mrb[0].mxu0
        %v1342 = vadd.f32 0.0, %v1341
        %v1343 = vpop.f32.mrb[0].mxu0
        %v1344 = vpop.f32.mrb[0].mxu0
        %v1345 = vadd.f32 0.0, %v1344
        %v1346 = vpop.f32.mrb[0].mxu0
        %1347 = vdwg.mxu0
        %1348 = vst.msk [vmem:[%s209] sm:$0xff] %vm256, %v1342
        %1349 = vst.msk [vmem:[%s209 + $0x8] sm:$0xff] %vm256, %v1345
        %s1350 = sand.u32 %s103, 1
        %s1351 = scalar_lea.sflag [#allocation3], %s1350
        %s1352 = sand.u32 %s103, 1
        %s1353 = smul.addr %s1352, 16
        %s1354 = scalar_lea.vmem [#allocation2], %s1353
        %s1355 = sand.u32 %s129, 1
        %s1356 = scalar_lea.sflag [#allocation5], %s1355
        %s1357 = sand.u32 %s129, 1
        %s1358 = smul.addr %s1357, 64
        %s1359 = scalar_lea.vmem [#allocation4], %s1358
        // Predicated region
        $region33: #{tpu_custom_call.1} parent=31 // pred_check
          %p1360 = pneg %p113
        $region34: #{tpu_custom_call.1} parent=31 // pred_check_branch
          %1362 = sbr.rel (%p1360) target = $region36
        $region35: #{tpu_custom_call.1} parent=31 // pred_region
          %s1364 = ssub.s32 256, 256
          %1365 = vsyncadd %s1351, %s1364
          %s1366 = smul.addr %s22, 2
          %s1367 = smul.addr %s1366, 128
          %s1368 = scalar_lea.hbm %s3, %s1367
          %s1369 = sshll.u32 %s1354, 4
          %s1370 = int_to_ptr.vmem [resolvable:$true] %s1369
          %1375 = dma.vmem_to_hbm [thread:$0]  %s1370, 256, %s1368, %s1351, 128, 128, 8
        $region36: #{tpu_custom_call.1} parent=31 // pred_fallthru
          _
        // Predicated region
        $region37: #{tpu_custom_call.1} parent=31 // pred_check
          %p1376 = pneg %p139
        $region38: #{tpu_custom_call.1} parent=31 // pred_check_branch
          %1378 = sbr.rel (%p1376) target = $region40
        $region39: #{tpu_custom_call.1} parent=31 // pred_region
          %s1380 = ssub.s32 1024, 1024
          %1381 = vsyncadd %s1356, %s1380
          %s1382 = smul.addr %s22, 8
          %s1383 = smul.addr %s1382, 128
          %s1384 = scalar_lea.hbm %s4, %s1383
          %s1385 = sshll.u32 %s1359, 4
          %s1386 = int_to_ptr.vmem [resolvable:$true] %s1385
          %1391 = dma.vmem_to_hbm [thread:$0]  %s1386, 1024, %s1384, %s1356, 128, 128, 8
        $region40: #{tpu_custom_call.1} parent=31 // pred_fallthru
          _
      $region32: #{tpu_custom_call.1} parent=5 // pred_fallthru
        _
      %p1392 = scmp.le.s32.totalorder 2, %s17
      // Predicated region
      $region41: #{tpu_custom_call.1} parent=5 // pred_check
        %p1393 = pneg %p1392
      $region42: #{tpu_custom_call.1} parent=5 // pred_check_branch
        %1395 = sbr.rel (%p1393) target = $region44
      $region43: #{tpu_custom_call.1} parent=5 // pred_region
        %s1396 = ssub.s32 %s17, 2
        // Predicated region
        $region45: #{tpu_custom_call.1} parent=43 // pred_check
          %p1397 = pneg %p119
        $region46: #{tpu_custom_call.1} parent=43 // pred_check_branch
          %1399 = sbr.rel (%p1397) target = $region48
        $region47: #{tpu_custom_call.1} parent=43 // pred_region
          %s1400 = sand.u32 %s104, 1
          %s1401 = scalar_lea.sflag [#allocation3], %s1400
          %s1402 = sand.u32 %s104, 1
          %s1403 = smul.addr %s1402, 16
          %s1404 = scalar_lea.vmem [#allocation2], %s1403
          %1405 = dma.done %s1401, 256
        $region48: #{tpu_custom_call.1} parent=43 // pred_fallthru
          _
        // Predicated region
        $region49: #{tpu_custom_call.1} parent=43 // pred_check
          %p1406 = pneg %p145
        $region50: #{tpu_custom_call.1} parent=43 // pred_check_branch
          %1408 = sbr.rel (%p1406) target = $region52
        $region51: #{tpu_custom_call.1} parent=43 // pred_region
          %s1409 = sand.u32 %s130, 1
          %s1410 = scalar_lea.sflag [#allocation5], %s1409
          %s1411 = sand.u32 %s130, 1
          %s1412 = smul.addr %s1411, 64
          %s1413 = scalar_lea.vmem [#allocation4], %s1412
          %1414 = dma.done %s1410, 1024
        $region52: #{tpu_custom_call.1} parent=43 // pred_fallthru
          _
      $region44: #{tpu_custom_call.1} parent=5 // pred_fallthru
        _
    $region6: #{tpu_custom_call.1} parent=1 // loop_footer
      %s21 = sadd.s32 1, %s17
    $region7: #{tpu_custom_call.1} parent=1 // loop_footer_branch
      %16 = sbr.rel target = $region3
    $region8: #{tpu_custom_call.1} parent=1 // loop_exit
      _
    %1415 = vsyncpa [#allocation3], 1
    %s1416 = scalar_lea.sflag [#allocation3], 1
    %1417 = vsyncpa %s1416, 1
    %1418 = vsyncpa [#allocation5], 1
    %s1419 = scalar_lea.sflag [#allocation5], 1
    %1420 = vsyncpa %s1419, 1

</llo_original>
